<compile_context>
chip_gen: v7x
topology: tpu7x:2x2x1
jax: 0.10.0
libtpu: 0.0.40
codegen_flags: <defaults>
</compile_context>

<pallas_src>
import jax
import jax.numpy as jnp
from jax import lax
from jax.experimental import pallas as pl
from jax.experimental.pallas import tpu as pltpu

# ---------------- problem sizes (small, consistent with the module) ----------------
DIM = 4          # ODEBlock.dim  -> out[i] = integrated[i][0, :DIM]
D = 2 * DIM      # full ODE state width (e.g. mRNA + protein in the PHX model)
B = 2            # batch size of the state passed to odeint
SUB = 8          # state rows padded to one full sublane tile (rows B..7 are free;
                 # extra trajectories could be packed here for throughput)
H = 32           # hidden width of the odefunc MLP
T = 8            # number of integration times
N_SUB = 4        # fixed RK4 sub-steps between consecutive integration times


# ---------------------------------- Pallas kernel ----------------------------------
def ode_block_kernel(dt_ref, hdt_ref, sdt_ref,                 # (T-1,) f32 in SMEM
                     x0_ref, w1_ref, b1_ref, w2_ref, b2_ref,   # VMEM inputs
                     out_ref):                                  # (T, D) VMEM output
    # ---- loop-invariant loads & broadcasts (done exactly once) ----
    w1 = w1_ref[...]                                   # (D, H)
    w2 = w2_ref[...]                                   # (H, D)
    b1b = jnp.broadcast_to(b1_ref[...], (SUB, H))      # (SUB, H) hoisted bias bcast
    b2b = jnp.broadcast_to(b2_ref[...], (SUB, D))      # (SUB, D) hoisted bias bcast
    # Pre-broadcast each row of W1 to a full sublane tile: layer-1 runs on the VPU
    # as K=8 outer-product MACs instead of a sub-MXU-sized f32 matmul.
    w1_rows = [jnp.broadcast_to(w1[k:k + 1, :], (SUB, H)) for k in range(D)]

    def f(y):
        # layer 1 on the VPU: h[s, :] = sum_k y[s, k] * W1[k, :]
        parts = [y[:, k:k + 1] * w1_rows[k] for k in range(D)]
        while len(parts) > 1:                           # balanced add tree (3 levels)
            parts = [parts[j] + parts[j + 1] for j in range(0, len(parts), 2)]
        h = jnp.tanh(parts[0] + b1b)
        # layer 2 on the MXU (K = 32)
        return jnp.dot(h, w2, preferred_element_type=jnp.float32) + b2b

    y0 = x0_ref[...]                      # (SUB, D) state, lives in vregs throughout
    out_ref[0:1, :] = y0[0:1, :]          # integrated[0] == initial state

    def interval(i, y):
        # per-interval step sizes: scalar SMEM reads, splatted to vregs once
        dt_v = jnp.full((SUB, D), dt_ref[i], jnp.float32)
        hdt_v = jnp.full((SUB, D), hdt_ref[i], jnp.float32)
        sdt_v = jnp.full((SUB, D), sdt_ref[i], jnp.float32)
        for _ in range(N_SUB):            # static unroll of RK4 sub-steps
            k1 = f(y)
            k2 = f(y + hdt_v * k1)
            k3 = f(y + hdt_v * k2)
            k4 = f(y + dt_v * k3)
            y = y + sdt_v * (k1 + 2.0 * (k2 + k3) + k4)
        out_ref[pl.ds(i + 1, 1), :] = y[0:1, :]
        return y

    lax.fori_loop(0, T - 1, interval, y0)


def ode_block_forward(x0, times, w1, b1, w2, b2):
    """Pallas implementation of ODEBlock.forward. Returns (T, 1, DIM) float32."""
    T_ = times.shape[0]
    # Precompute per-interval step sizes (kept off the in-kernel critical path).
    dts = (times[1:] - times[:-1]) / jnp.float32(N_SUB)    # (T-1,)
    hdts = 0.5 * dts
    sdts = dts / jnp.float32(6.0)

    # Pad the state batch to a full 8-row sublane tile (extra rows are free).
    x0p = jnp.zeros((SUB, D), jnp.float32).at[:B].set(x0)

    out2d = pl.pallas_call(
        ode_block_kernel,
        out_shape=jax.ShapeDtypeStruct((T_, D), jnp.float32),
        in_specs=[
            pl.BlockSpec(memory_space=pltpu.MemorySpace.SMEM),   # dts
            pl.BlockSpec(memory_space=pltpu.MemorySpace.SMEM),   # 0.5*dts
            pl.BlockSpec(memory_space=pltpu.MemorySpace.SMEM),   # dts/6
            pl.BlockSpec(memory_space=pltpu.MemorySpace.VMEM),   # x0 (padded)
            pl.BlockSpec(memory_space=pltpu.MemorySpace.VMEM),   # W1
            pl.BlockSpec(memory_space=pltpu.MemorySpace.VMEM),   # b1
            pl.BlockSpec(memory_space=pltpu.MemorySpace.VMEM),   # W2
            pl.BlockSpec(memory_space=pltpu.MemorySpace.VMEM),   # b2
        ],
        out_specs=pl.BlockSpec(memory_space=pltpu.MemorySpace.VMEM),
    )(dts, hdts, sdts, x0p, w1, b1, w2, b2)

    # out[i] = integrated[i][0, :DIM]  ->  (T, 1, DIM); wrapper-side layout plumbing.
    return out2d[:, :DIM].reshape(T_, 1, DIM)


# ------------------------------- pure-JAX reference --------------------------------
def ode_block_reference(x0, times, w1, b1, w2, b2):
    def f(y):
        return jnp.tanh(y @ w1 + b1) @ w2 + b2

    dts = (times[1:] - times[:-1]) / jnp.float32(N_SUB)
    outs = [x0[0, :DIM][None, :]]
    y = x0
    for i in range(T - 1):
        dt = dts[i]
        hdt = 0.5 * dt
        sdt = dt / 6.0
        for _ in range(N_SUB):
            k1 = f(y)
            k2 = f(y + hdt * k1)
            k3 = f(y + hdt * k2)
            k4 = f(y + dt * k3)
            y = y + sdt * (k1 + 2.0 * (k2 + k3) + k4)
        outs.append(y[0, :DIM][None, :])
    return jnp.stack(outs, axis=0)


# --------------------------------------- main ---------------------------------------
if __name__ == "__main__":
    key = jax.random.PRNGKey(0)
    k_x, k_w1, k_b1, k_w2, k_b2 = jax.random.split(key, 5)

    # deterministic synthetic parameters (shapes implied by the odefunc MLP)
    x0 = jax.random.normal(k_x, (B, D), dtype=jnp.float32)
    w1 = jax.random.normal(k_w1, (D, H), dtype=jnp.float32) * 0.3
    b1 = jax.random.normal(k_b1, (1, H), dtype=jnp.float32) * 0.1
    w2 = jax.random.normal(k_w2, (H, D), dtype=jnp.float32) * 0.3
    b2 = jax.random.normal(k_b2, (1, D), dtype=jnp.float32) * 0.1

    # ODEBlock.set_times(times)
    times = jnp.linspace(0.0, 1.0, T, dtype=jnp.float32)

    out = ode_block_forward(x0, times, w1, b1, w2, b2)
    out = jax.block_until_ready(out)

    ref = ode_block_reference(x0, times, w1, b1, w2, b2)
    assert out.shape == (T, 1, DIM), out.shape
    assert jnp.allclose(out, ref, rtol=1e-4, atol=1e-4), (
        f"max abs err {jnp.max(jnp.abs(out - ref))}"
    )
    print("KERNEL_OK")
</pallas_src>

<mosaic_0001>
module attributes {stable_mosaic.version = 11 : i64} {
  func.func @ode_block_kernel(%arg0: memref<7xf32, #tpu.memory_space<smem>>, %arg1: memref<7xf32, #tpu.memory_space<smem>>, %arg2: memref<7xf32, #tpu.memory_space<smem>>, %arg3: memref<8x8xf32, #tpu.memory_space<vmem>>, %arg4: memref<8x32xf32, #tpu.memory_space<vmem>>, %arg5: memref<1x32xf32, #tpu.memory_space<vmem>>, %arg6: memref<32x8xf32, #tpu.memory_space<vmem>>, %arg7: memref<1x8xf32, #tpu.memory_space<vmem>>, %arg8: memref<8x8xf32, #tpu.memory_space<vmem>>) attributes {dimension_semantics = [], scalar_prefetch = 0 : i64, scratch_operands = 0 : i64, tpu.core_type = #tpu.core_type<tc>} {
    %c0 = arith.constant 0 : index
    %c0_0 = arith.constant 0 : index
    %0 = vector.load %arg4[%c0, %c0_0] : memref<8x32xf32, #tpu.memory_space<vmem>>, vector<8x32xf32>
    %c0_1 = arith.constant 0 : index
    %c0_2 = arith.constant 0 : index
    %1 = vector.load %arg6[%c0_1, %c0_2] : memref<32x8xf32, #tpu.memory_space<vmem>>, vector<32x8xf32>
    %c0_3 = arith.constant 0 : index
    %c0_4 = arith.constant 0 : index
    %2 = vector.load %arg5[%c0_3, %c0_4] : memref<1x32xf32, #tpu.memory_space<vmem>>, vector<1x32xf32>
    %3 = vector.shape_cast %2 : vector<1x32xf32> to vector<1x32xf32>
    %4 = vector.broadcast %3 : vector<1x32xf32> to vector<8x32xf32>
    %c0_5 = arith.constant 0 : index
    %c0_6 = arith.constant 0 : index
    %5 = vector.load %arg7[%c0_5, %c0_6] : memref<1x8xf32, #tpu.memory_space<vmem>>, vector<1x8xf32>
    %6 = vector.shape_cast %5 : vector<1x8xf32> to vector<1x8xf32>
    %7 = vector.broadcast %6 : vector<1x8xf32> to vector<8x8xf32>
    %8 = vector.extract_strided_slice %0 {offsets = [0, 0], sizes = [1, 32], strides = [1, 1]} : vector<8x32xf32> to vector<1x32xf32>
    %9 = vector.shape_cast %8 : vector<1x32xf32> to vector<1x32xf32>
    %10 = vector.broadcast %9 : vector<1x32xf32> to vector<8x32xf32>
    %11 = vector.extract_strided_slice %0 {offsets = [1, 0], sizes = [1, 32], strides = [1, 1]} : vector<8x32xf32> to vector<1x32xf32>
    %12 = vector.shape_cast %11 : vector<1x32xf32> to vector<1x32xf32>
    %13 = vector.broadcast %12 : vector<1x32xf32> to vector<8x32xf32>
    %14 = vector.extract_strided_slice %0 {offsets = [2, 0], sizes = [1, 32], strides = [1, 1]} : vector<8x32xf32> to vector<1x32xf32>
    %15 = vector.shape_cast %14 : vector<1x32xf32> to vector<1x32xf32>
    %16 = vector.broadcast %15 : vector<1x32xf32> to vector<8x32xf32>
    %17 = vector.extract_strided_slice %0 {offsets = [3, 0], sizes = [1, 32], strides = [1, 1]} : vector<8x32xf32> to vector<1x32xf32>
    %18 = vector.shape_cast %17 : vector<1x32xf32> to vector<1x32xf32>
    %19 = vector.broadcast %18 : vector<1x32xf32> to vector<8x32xf32>
    %20 = vector.extract_strided_slice %0 {offsets = [4, 0], sizes = [1, 32], strides = [1, 1]} : vector<8x32xf32> to vector<1x32xf32>
    %21 = vector.shape_cast %20 : vector<1x32xf32> to vector<1x32xf32>
    %22 = vector.broadcast %21 : vector<1x32xf32> to vector<8x32xf32>
    %23 = vector.extract_strided_slice %0 {offsets = [5, 0], sizes = [1, 32], strides = [1, 1]} : vector<8x32xf32> to vector<1x32xf32>
    %24 = vector.shape_cast %23 : vector<1x32xf32> to vector<1x32xf32>
    %25 = vector.broadcast %24 : vector<1x32xf32> to vector<8x32xf32>
    %26 = vector.extract_strided_slice %0 {offsets = [6, 0], sizes = [1, 32], strides = [1, 1]} : vector<8x32xf32> to vector<1x32xf32>
    %27 = vector.shape_cast %26 : vector<1x32xf32> to vector<1x32xf32>
    %28 = vector.broadcast %27 : vector<1x32xf32> to vector<8x32xf32>
    %29 = vector.extract_strided_slice %0 {offsets = [7, 0], sizes = [1, 32], strides = [1, 1]} : vector<8x32xf32> to vector<1x32xf32>
    %30 = vector.shape_cast %29 : vector<1x32xf32> to vector<1x32xf32>
    %31 = vector.broadcast %30 : vector<1x32xf32> to vector<8x32xf32>
    %c0_7 = arith.constant 0 : index
    %c0_8 = arith.constant 0 : index
    %32 = vector.load %arg3[%c0_7, %c0_8] : memref<8x8xf32, #tpu.memory_space<vmem>>, vector<8x8xf32>
    %33 = vector.extract_strided_slice %32 {offsets = [0, 0], sizes = [1, 8], strides = [1, 1]} : vector<8x8xf32> to vector<1x8xf32>
    %c0_9 = arith.constant 0 : index
    %c0_10 = arith.constant 0 : index
    %34 = vector.load %arg8[%c0_9, %c0_10] : memref<8x8xf32, #tpu.memory_space<vmem>>, vector<1x8xf32>
    tpu.vector_store %arg8[%c0_9, %c0_10], %33 {strides = array<i32>} : memref<8x8xf32, #tpu.memory_space<vmem>>, vector<1x8xf32>,
    %c0_i32 = arith.constant 0 : i32
    %c7_i32 = arith.constant 7 : i32
    %35 = arith.addi %c0_i32, %c7_i32 : i32
    %c1_i32 = arith.constant 1 : i32
    %36 = scf.for %arg9 = %c0_i32 to %35 step %c1_i32 iter_args(%arg10 = %32) -> (vector<8x8xf32>)  : i32 {
      %37 = arith.index_cast %arg9 : i32 to index
      %38 = memref.load %arg0[%37] : memref<7xf32, #tpu.memory_space<smem>>
      %39 = vector.broadcast %38 : f32 to vector<8x8xf32>
      %40 = arith.index_cast %arg9 : i32 to index
      %41 = memref.load %arg1[%40] : memref<7xf32, #tpu.memory_space<smem>>
      %42 = vector.broadcast %41 : f32 to vector<8x8xf32>
      %43 = arith.index_cast %arg9 : i32 to index
      %44 = memref.load %arg2[%43] : memref<7xf32, #tpu.memory_space<smem>>
      %45 = vector.broadcast %44 : f32 to vector<8x8xf32>
      %46 = vector.extract_strided_slice %arg10 {offsets = [0, 0], sizes = [8, 1], strides = [1, 1]} : vector<8x8xf32> to vector<8x1xf32>
      %47 = vector.broadcast %46 : vector<8x1xf32> to vector<8x32xf32>
      %48 = arith.mulf %47, %10 : vector<8x32xf32>
      %49 = vector.extract_strided_slice %arg10 {offsets = [0, 1], sizes = [8, 1], strides = [1, 1]} : vector<8x8xf32> to vector<8x1xf32>
      %50 = vector.broadcast %49 : vector<8x1xf32> to vector<8x32xf32>
      %51 = arith.mulf %50, %13 : vector<8x32xf32>
      %52 = vector.extract_strided_slice %arg10 {offsets = [0, 2], sizes = [8, 1], strides = [1, 1]} : vector<8x8xf32> to vector<8x1xf32>
      %53 = vector.broadcast %52 : vector<8x1xf32> to vector<8x32xf32>
      %54 = arith.mulf %53, %16 : vector<8x32xf32>
      %55 = vector.extract_strided_slice %arg10 {offsets = [0, 3], sizes = [8, 1], strides = [1, 1]} : vector<8x8xf32> to vector<8x1xf32>
      %56 = vector.broadcast %55 : vector<8x1xf32> to vector<8x32xf32>
      %57 = arith.mulf %56, %19 : vector<8x32xf32>
      %58 = vector.extract_strided_slice %arg10 {offsets = [0, 4], sizes = [8, 1], strides = [1, 1]} : vector<8x8xf32> to vector<8x1xf32>
      %59 = vector.broadcast %58 : vector<8x1xf32> to vector<8x32xf32>
      %60 = arith.mulf %59, %22 : vector<8x32xf32>
      %61 = vector.extract_strided_slice %arg10 {offsets = [0, 5], sizes = [8, 1], strides = [1, 1]} : vector<8x8xf32> to vector<8x1xf32>
      %62 = vector.broadcast %61 : vector<8x1xf32> to vector<8x32xf32>
      %63 = arith.mulf %62, %25 : vector<8x32xf32>
      %64 = vector.extract_strided_slice %arg10 {offsets = [0, 6], sizes = [8, 1], strides = [1, 1]} : vector<8x8xf32> to vector<8x1xf32>
      %65 = vector.broadcast %64 : vector<8x1xf32> to vector<8x32xf32>
      %66 = arith.mulf %65, %28 : vector<8x32xf32>
      %67 = vector.extract_strided_slice %arg10 {offsets = [0, 7], sizes = [8, 1], strides = [1, 1]} : vector<8x8xf32> to vector<8x1xf32>
      %68 = vector.broadcast %67 : vector<8x1xf32> to vector<8x32xf32>
      %69 = arith.mulf %68, %31 : vector<8x32xf32>
      %70 = arith.addf %48, %51 : vector<8x32xf32>
      %71 = arith.addf %54, %57 : vector<8x32xf32>
      %72 = arith.addf %60, %63 : vector<8x32xf32>
      %73 = arith.addf %66, %69 : vector<8x32xf32>
      %74 = arith.addf %70, %71 : vector<8x32xf32>
      %75 = arith.addf %72, %73 : vector<8x32xf32>
      %76 = arith.addf %74, %75 : vector<8x32xf32>
      %77 = arith.addf %76, %4 : vector<8x32xf32>
      %78 = math.tanh %77 : vector<8x32xf32>
      %cst = arith.constant dense<0.000000e+00> : vector<8x8xf32>
      %79 = tpu.matmul %78, %1, %cst {dimension_numbers = #tpu.dot_dimension_numbers<[1], [0], [0], [1], [0, 0, 1, 1], [], []>} : vector<8x32xf32>, vector<32x8xf32>, vector<8x8xf32> -> vector<8x8xf32>
      %80 = arith.addf %79, %7 : vector<8x8xf32>
      %81 = arith.mulf %42, %80 : vector<8x8xf32>
      %82 = arith.addf %arg10, %81 : vector<8x8xf32>
      %83 = vector.extract_strided_slice %82 {offsets = [0, 0], sizes = [8, 1], strides = [1, 1]} : vector<8x8xf32> to vector<8x1xf32>
      %84 = vector.broadcast %83 : vector<8x1xf32> to vector<8x32xf32>
      %85 = arith.mulf %84, %10 : vector<8x32xf32>
      %86 = vector.extract_strided_slice %82 {offsets = [0, 1], sizes = [8, 1], strides = [1, 1]} : vector<8x8xf32> to vector<8x1xf32>
      %87 = vector.broadcast %86 : vector<8x1xf32> to vector<8x32xf32>
      %88 = arith.mulf %87, %13 : vector<8x32xf32>
      %89 = vector.extract_strided_slice %82 {offsets = [0, 2], sizes = [8, 1], strides = [1, 1]} : vector<8x8xf32> to vector<8x1xf32>
      %90 = vector.broadcast %89 : vector<8x1xf32> to vector<8x32xf32>
      %91 = arith.mulf %90, %16 : vector<8x32xf32>
      %92 = vector.extract_strided_slice %82 {offsets = [0, 3], sizes = [8, 1], strides = [1, 1]} : vector<8x8xf32> to vector<8x1xf32>
      %93 = vector.broadcast %92 : vector<8x1xf32> to vector<8x32xf32>
      %94 = arith.mulf %93, %19 : vector<8x32xf32>
      %95 = vector.extract_strided_slice %82 {offsets = [0, 4], sizes = [8, 1], strides = [1, 1]} : vector<8x8xf32> to vector<8x1xf32>
      %96 = vector.broadcast %95 : vector<8x1xf32> to vector<8x32xf32>
      %97 = arith.mulf %96, %22 : vector<8x32xf32>
      %98 = vector.extract_strided_slice %82 {offsets = [0, 5], sizes = [8, 1], strides = [1, 1]} : vector<8x8xf32> to vector<8x1xf32>
      %99 = vector.broadcast %98 : vector<8x1xf32> to vector<8x32xf32>
      %100 = arith.mulf %99, %25 : vector<8x32xf32>
      %101 = vector.extract_strided_slice %82 {offsets = [0, 6], sizes = [8, 1], strides = [1, 1]} : vector<8x8xf32> to vector<8x1xf32>
      %102 = vector.broadcast %101 : vector<8x1xf32> to vector<8x32xf32>
      %103 = arith.mulf %102, %28 : vector<8x32xf32>
      %104 = vector.extract_strided_slice %82 {offsets = [0, 7], sizes = [8, 1], strides = [1, 1]} : vector<8x8xf32> to vector<8x1xf32>
      %105 = vector.broadcast %104 : vector<8x1xf32> to vector<8x32xf32>
      %106 = arith.mulf %105, %31 : vector<8x32xf32>
      %107 = arith.addf %85, %88 : vector<8x32xf32>
      %108 = arith.addf %91, %94 : vector<8x32xf32>
      %109 = arith.addf %97, %100 : vector<8x32xf32>
      %110 = arith.addf %103, %106 : vector<8x32xf32>
      %111 = arith.addf %107, %108 : vector<8x32xf32>
      %112 = arith.addf %109, %110 : vector<8x32xf32>
      %113 = arith.addf %111, %112 : vector<8x32xf32>
      %114 = arith.addf %113, %4 : vector<8x32xf32>
      %115 = math.tanh %114 : vector<8x32xf32>
      %cst_12 = arith.constant dense<0.000000e+00> : vector<8x8xf32>
      %116 = tpu.matmul %115, %1, %cst_12 {dimension_numbers = #tpu.dot_dimension_numbers<[1], [0], [0], [1], [0, 0, 1, 1], [], []>} : vector<8x32xf32>, vector<32x8xf32>, vector<8x8xf32> -> vector<8x8xf32>
      %117 = arith.addf %116, %7 : vector<8x8xf32>
      %118 = arith.mulf %42, %117 : vector<8x8xf32>
      %119 = arith.addf %arg10, %118 : vector<8x8xf32>
      %120 = vector.extract_strided_slice %119 {offsets = [0, 0], sizes = [8, 1], strides = [1, 1]} : vector<8x8xf32> to vector<8x1xf32>
      %121 = vector.broadcast %120 : vector<8x1xf32> to vector<8x32xf32>
      %122 = arith.mulf %121, %10 : vector<8x32xf32>
      %123 = vector.extract_strided_slice %119 {offsets = [0, 1], sizes = [8, 1], strides = [1, 1]} : vector<8x8xf32> to vector<8x1xf32>
      %124 = vector.broadcast %123 : vector<8x1xf32> to vector<8x32xf32>
      %125 = arith.mulf %124, %13 : vector<8x32xf32>
      %126 = vector.extract_strided_slice %119 {offsets = [0, 2], sizes = [8, 1], strides = [1, 1]} : vector<8x8xf32> to vector<8x1xf32>
      %127 = vector.broadcast %126 : vector<8x1xf32> to vector<8x32xf32>
      %128 = arith.mulf %127, %16 : vector<8x32xf32>
      %129 = vector.extract_strided_slice %119 {offsets = [0, 3], sizes = [8, 1], strides = [1, 1]} : vector<8x8xf32> to vector<8x1xf32>
      %130 = vector.broadcast %129 : vector<8x1xf32> to vector<8x32xf32>
      %131 = arith.mulf %130, %19 : vector<8x32xf32>
      %132 = vector.extract_strided_slice %119 {offsets = [0, 4], sizes = [8, 1], strides = [1, 1]} : vector<8x8xf32> to vector<8x1xf32>
      %133 = vector.broadcast %132 : vector<8x1xf32> to vector<8x32xf32>
      %134 = arith.mulf %133, %22 : vector<8x32xf32>
      %135 = vector.extract_strided_slice %119 {offsets = [0, 5], sizes = [8, 1], strides = [1, 1]} : vector<8x8xf32> to vector<8x1xf32>
      %136 = vector.broadcast %135 : vector<8x1xf32> to vector<8x32xf32>
      %137 = arith.mulf %136, %25 : vector<8x32xf32>
      %138 = vector.extract_strided_slice %119 {offsets = [0, 6], sizes = [8, 1], strides = [1, 1]} : vector<8x8xf32> to vector<8x1xf32>
      %139 = vector.broadcast %138 : vector<8x1xf32> to vector<8x32xf32>
      %140 = arith.mulf %139, %28 : vector<8x32xf32>
      %141 = vector.extract_strided_slice %119 {offsets = [0, 7], sizes = [8, 1], strides = [1, 1]} : vector<8x8xf32> to vector<8x1xf32>
      %142 = vector.broadcast %141 : vector<8x1xf32> to vector<8x32xf32>
      %143 = arith.mulf %142, %31 : vector<8x32xf32>
      %144 = arith.addf %122, %125 : vector<8x32xf32>
      %145 = arith.addf %128, %131 : vector<8x32xf32>
      %146 = arith.addf %134, %137 : vector<8x32xf32>
      %147 = arith.addf %140, %143 : vector<8x32xf32>
      %148 = arith.addf %144, %145 : vector<8x32xf32>
      %149 = arith.addf %146, %147 : vector<8x32xf32>
      %150 = arith.addf %148, %149 : vector<8x32xf32>
      %151 = arith.addf %150, %4 : vector<8x32xf32>
      %152 = math.tanh %151 : vector<8x32xf32>
      %cst_13 = arith.constant dense<0.000000e+00> : vector<8x8xf32>
      %153 = tpu.matmul %152, %1, %cst_13 {dimension_numbers = #tpu.dot_dimension_numbers<[1], [0], [0], [1], [0, 0, 1, 1], [], []>} : vector<8x32xf32>, vector<32x8xf32>, vector<8x8xf32> -> vector<8x8xf32>
      %154 = arith.addf %153, %7 : vector<8x8xf32>
      %155 = arith.mulf %39, %154 : vector<8x8xf32>
      %156 = arith.addf %arg10, %155 : vector<8x8xf32>
      %157 = vector.extract_strided_slice %156 {offsets = [0, 0], sizes = [8, 1], strides = [1, 1]} : vector<8x8xf32> to vector<8x1xf32>
      %158 = vector.broadcast %157 : vector<8x1xf32> to vector<8x32xf32>
      %159 = arith.mulf %158, %10 : vector<8x32xf32>
      %160 = vector.extract_strided_slice %156 {offsets = [0, 1], sizes = [8, 1], strides = [1, 1]} : vector<8x8xf32> to vector<8x1xf32>
      %161 = vector.broadcast %160 : vector<8x1xf32> to vector<8x32xf32>
      %162 = arith.mulf %161, %13 : vector<8x32xf32>
      %163 = vector.extract_strided_slice %156 {offsets = [0, 2], sizes = [8, 1], strides = [1, 1]} : vector<8x8xf32> to vector<8x1xf32>
      %164 = vector.broadcast %163 : vector<8x1xf32> to vector<8x32xf32>
      %165 = arith.mulf %164, %16 : vector<8x32xf32>
      %166 = vector.extract_strided_slice %156 {offsets = [0, 3], sizes = [8, 1], strides = [1, 1]} : vector<8x8xf32> to vector<8x1xf32>
      %167 = vector.broadcast %166 : vector<8x1xf32> to vector<8x32xf32>
      %168 = arith.mulf %167, %19 : vector<8x32xf32>
      %169 = vector.extract_strided_slice %156 {offsets = [0, 4], sizes = [8, 1], strides = [1, 1]} : vector<8x8xf32> to vector<8x1xf32>
      %170 = vector.broadcast %169 : vector<8x1xf32> to vector<8x32xf32>
      %171 = arith.mulf %170, %22 : vector<8x32xf32>
      %172 = vector.extract_strided_slice %156 {offsets = [0, 5], sizes = [8, 1], strides = [1, 1]} : vector<8x8xf32> to vector<8x1xf32>
      %173 = vector.broadcast %172 : vector<8x1xf32> to vector<8x32xf32>
      %174 = arith.mulf %173, %25 : vector<8x32xf32>
      %175 = vector.extract_strided_slice %156 {offsets = [0, 6], sizes = [8, 1], strides = [1, 1]} : vector<8x8xf32> to vector<8x1xf32>
      %176 = vector.broadcast %175 : vector<8x1xf32> to vector<8x32xf32>
      %177 = arith.mulf %176, %28 : vector<8x32xf32>
      %178 = vector.extract_strided_slice %156 {offsets = [0, 7], sizes = [8, 1], strides = [1, 1]} : vector<8x8xf32> to vector<8x1xf32>
      %179 = vector.broadcast %178 : vector<8x1xf32> to vector<8x32xf32>
      %180 = arith.mulf %179, %31 : vector<8x32xf32>
      %181 = arith.addf %159, %162 : vector<8x32xf32>
      %182 = arith.addf %165, %168 : vector<8x32xf32>
      %183 = arith.addf %171, %174 : vector<8x32xf32>
      %184 = arith.addf %177, %180 : vector<8x32xf32>
      %185 = arith.addf %181, %182 : vector<8x32xf32>
      %186 = arith.addf %183, %184 : vector<8x32xf32>
      %187 = arith.addf %185, %186 : vector<8x32xf32>
      %188 = arith.addf %187, %4 : vector<8x32xf32>
      %189 = math.tanh %188 : vector<8x32xf32>
      %cst_14 = arith.constant dense<0.000000e+00> : vector<8x8xf32>
      %190 = tpu.matmul %189, %1, %cst_14 {dimension_numbers = #tpu.dot_dimension_numbers<[1], [0], [0], [1], [0, 0, 1, 1], [], []>} : vector<8x32xf32>, vector<32x8xf32>, vector<8x8xf32> -> vector<8x8xf32>
      %191 = arith.addf %190, %7 : vector<8x8xf32>
      %192 = arith.addf %117, %154 : vector<8x8xf32>
      %cst_15 = arith.constant 2.000000e+00 : f32
      %193 = vector.broadcast %cst_15 : f32 to vector<8x8xf32>
      %194 = arith.mulf %193, %192 : vector<8x8xf32>
      %195 = arith.addf %80, %194 : vector<8x8xf32>
      %196 = arith.addf %195, %191 : vector<8x8xf32>
      %197 = arith.mulf %45, %196 : vector<8x8xf32>
      %198 = arith.addf %arg10, %197 : vector<8x8xf32>
      %199 = vector.extract_strided_slice %198 {offsets = [0, 0], sizes = [8, 1], strides = [1, 1]} : vector<8x8xf32> to vector<8x1xf32>
      %200 = vector.broadcast %199 : vector<8x1xf32> to vector<8x32xf32>
      %201 = arith.mulf %200, %10 : vector<8x32xf32>
      %202 = vector.extract_strided_slice %198 {offsets = [0, 1], sizes = [8, 1], strides = [1, 1]} : vector<8x8xf32> to vector<8x1xf32>
      %203 = vector.broadcast %202 : vector<8x1xf32> to vector<8x32xf32>
      %204 = arith.mulf %203, %13 : vector<8x32xf32>
      %205 = vector.extract_strided_slice %198 {offsets = [0, 2], sizes = [8, 1], strides = [1, 1]} : vector<8x8xf32> to vector<8x1xf32>
      %206 = vector.broadcast %205 : vector<8x1xf32> to vector<8x32xf32>
      %207 = arith.mulf %206, %16 : vector<8x32xf32>
      %208 = vector.extract_strided_slice %198 {offsets = [0, 3], sizes = [8, 1], strides = [1, 1]} : vector<8x8xf32> to vector<8x1xf32>
      %209 = vector.broadcast %208 : vector<8x1xf32> to vector<8x32xf32>
      %210 = arith.mulf %209, %19 : vector<8x32xf32>
      %211 = vector.extract_strided_slice %198 {offsets = [0, 4], sizes = [8, 1], strides = [1, 1]} : vector<8x8xf32> to vector<8x1xf32>
      %212 = vector.broadcast %211 : vector<8x1xf32> to vector<8x32xf32>
      %213 = arith.mulf %212, %22 : vector<8x32xf32>
      %214 = vector.extract_strided_slice %198 {offsets = [0, 5], sizes = [8, 1], strides = [1, 1]} : vector<8x8xf32> to vector<8x1xf32>
      %215 = vector.broadcast %214 : vector<8x1xf32> to vector<8x32xf32>
      %216 = arith.mulf %215, %25 : vector<8x32xf32>
      %217 = vector.extract_strided_slice %198 {offsets = [0, 6], sizes = [8, 1], strides = [1, 1]} : vector<8x8xf32> to vector<8x1xf32>
      %218 = vector.broadcast %217 : vector<8x1xf32> to vector<8x32xf32>
      %219 = arith.mulf %218, %28 : vector<8x32xf32>
      %220 = vector.extract_strided_slice %198 {offsets = [0, 7], sizes = [8, 1], strides = [1, 1]} : vector<8x8xf32> to vector<8x1xf32>
      %221 = vector.broadcast %220 : vector<8x1xf32> to vector<8x32xf32>
      %222 = arith.mulf %221, %31 : vector<8x32xf32>
      %223 = arith.addf %201, %204 : vector<8x32xf32>
      %224 = arith.addf %207, %210 : vector<8x32xf32>
      %225 = arith.addf %213, %216 : vector<8x32xf32>
      %226 = arith.addf %219, %222 : vector<8x32xf32>
      %227 = arith.addf %223, %224 : vector<8x32xf32>
      %228 = arith.addf %225, %226 : vector<8x32xf32>
      %229 = arith.addf %227, %228 : vector<8x32xf32>
      %230 = arith.addf %229, %4 : vector<8x32xf32>
      %231 = math.tanh %230 : vector<8x32xf32>
      %cst_16 = arith.constant dense<0.000000e+00> : vector<8x8xf32>
      %232 = tpu.matmul %231, %1, %cst_16 {dimension_numbers = #tpu.dot_dimension_numbers<[1], [0], [0], [1], [0, 0, 1, 1], [], []>} : vector<8x32xf32>, vector<32x8xf32>, vector<8x8xf32> -> vector<8x8xf32>
      %233 = arith.addf %232, %7 : vector<8x8xf32>
      %234 = arith.mulf %42, %233 : vector<8x8xf32>
      %235 = arith.addf %198, %234 : vector<8x8xf32>
      %236 = vector.extract_strided_slice %235 {offsets = [0, 0], sizes = [8, 1], strides = [1, 1]} : vector<8x8xf32> to vector<8x1xf32>
      %237 = vector.broadcast %236 : vector<8x1xf32> to vector<8x32xf32>
      %238 = arith.mulf %237, %10 : vector<8x32xf32>
      %239 = vector.extract_strided_slice %235 {offsets = [0, 1], sizes = [8, 1], strides = [1, 1]} : vector<8x8xf32> to vector<8x1xf32>
      %240 = vector.broadcast %239 : vector<8x1xf32> to vector<8x32xf32>
      %241 = arith.mulf %240, %13 : vector<8x32xf32>
      %242 = vector.extract_strided_slice %235 {offsets = [0, 2], sizes = [8, 1], strides = [1, 1]} : vector<8x8xf32> to vector<8x1xf32>
      %243 = vector.broadcast %242 : vector<8x1xf32> to vector<8x32xf32>
      %244 = arith.mulf %243, %16 : vector<8x32xf32>
      %245 = vector.extract_strided_slice %235 {offsets = [0, 3], sizes = [8, 1], strides = [1, 1]} : vector<8x8xf32> to vector<8x1xf32>
      %246 = vector.broadcast %245 : vector<8x1xf32> to vector<8x32xf32>
      %247 = arith.mulf %246, %19 : vector<8x32xf32>
      %248 = vector.extract_strided_slice %235 {offsets = [0, 4], sizes = [8, 1], strides = [1, 1]} : vector<8x8xf32> to vector<8x1xf32>
      %249 = vector.broadcast %248 : vector<8x1xf32> to vector<8x32xf32>
      %250 = arith.mulf %249, %22 : vector<8x32xf32>
      %251 = vector.extract_strided_slice %235 {offsets = [0, 5], sizes = [8, 1], strides = [1, 1]} : vector<8x8xf32> to vector<8x1xf32>
      %252 = vector.broadcast %251 : vector<8x1xf32> to vector<8x32xf32>
      %253 = arith.mulf %252, %25 : vector<8x32xf32>
      %254 = vector.extract_strided_slice %235 {offsets = [0, 6], sizes = [8, 1], strides = [1, 1]} : vector<8x8xf32> to vector<8x1xf32>
      %255 = vector.broadcast %254 : vector<8x1xf32> to vector<8x32xf32>
      %256 = arith.mulf %255, %28 : vector<8x32xf32>
      %257 = vector.extract_strided_slice %235 {offsets = [0, 7], sizes = [8, 1], strides = [1, 1]} : vector<8x8xf32> to vector<8x1xf32>
      %258 = vector.broadcast %257 : vector<8x1xf32> to vector<8x32xf32>
      %259 = arith.mulf %258, %31 : vector<8x32xf32>
      %260 = arith.addf %238, %241 : vector<8x32xf32>
      %261 = arith.addf %244, %247 : vector<8x32xf32>
      %262 = arith.addf %250, %253 : vector<8x32xf32>
      %263 = arith.addf %256, %259 : vector<8x32xf32>
      %264 = arith.addf %260, %261 : vector<8x32xf32>
      %265 = arith.addf %262, %263 : vector<8x32xf32>
      %266 = arith.addf %264, %265 : vector<8x32xf32>
      %267 = arith.addf %266, %4 : vector<8x32xf32>
      %268 = math.tanh %267 : vector<8x32xf32>
      %cst_17 = arith.constant dense<0.000000e+00> : vector<8x8xf32>
      %269 = tpu.matmul %268, %1, %cst_17 {dimension_numbers = #tpu.dot_dimension_numbers<[1], [0], [0], [1], [0, 0, 1, 1], [], []>} : vector<8x32xf32>, vector<32x8xf32>, vector<8x8xf32> -> vector<8x8xf32>
      %270 = arith.addf %269, %7 : vector<8x8xf32>
      %271 = arith.mulf %42, %270 : vector<8x8xf32>
      %272 = arith.addf %198, %271 : vector<8x8xf32>
      %273 = vector.extract_strided_slice %272 {offsets = [0, 0], sizes = [8, 1], strides = [1, 1]} : vector<8x8xf32> to vector<8x1xf32>
      %274 = vector.broadcast %273 : vector<8x1xf32> to vector<8x32xf32>
      %275 = arith.mulf %274, %10 : vector<8x32xf32>
      %276 = vector.extract_strided_slice %272 {offsets = [0, 1], sizes = [8, 1], strides = [1, 1]} : vector<8x8xf32> to vector<8x1xf32>
      %277 = vector.broadcast %276 : vector<8x1xf32> to vector<8x32xf32>
      %278 = arith.mulf %277, %13 : vector<8x32xf32>
      %279 = vector.extract_strided_slice %272 {offsets = [0, 2], sizes = [8, 1], strides = [1, 1]} : vector<8x8xf32> to vector<8x1xf32>
      %280 = vector.broadcast %279 : vector<8x1xf32> to vector<8x32xf32>
      %281 = arith.mulf %280, %16 : vector<8x32xf32>
      %282 = vector.extract_strided_slice %272 {offsets = [0, 3], sizes = [8, 1], strides = [1, 1]} : vector<8x8xf32> to vector<8x1xf32>
      %283 = vector.broadcast %282 : vector<8x1xf32> to vector<8x32xf32>
      %284 = arith.mulf %283, %19 : vector<8x32xf32>
      %285 = vector.extract_strided_slice %272 {offsets = [0, 4], sizes = [8, 1], strides = [1, 1]} : vector<8x8xf32> to vector<8x1xf32>
      %286 = vector.broadcast %285 : vector<8x1xf32> to vector<8x32xf32>
      %287 = arith.mulf %286, %22 : vector<8x32xf32>
      %288 = vector.extract_strided_slice %272 {offsets = [0, 5], sizes = [8, 1], strides = [1, 1]} : vector<8x8xf32> to vector<8x1xf32>
      %289 = vector.broadcast %288 : vector<8x1xf32> to vector<8x32xf32>
      %290 = arith.mulf %289, %25 : vector<8x32xf32>
      %291 = vector.extract_strided_slice %272 {offsets = [0, 6], sizes = [8, 1], strides = [1, 1]} : vector<8x8xf32> to vector<8x1xf32>
      %292 = vector.broadcast %291 : vector<8x1xf32> to vector<8x32xf32>
      %293 = arith.mulf %292, %28 : vector<8x32xf32>
      %294 = vector.extract_strided_slice %272 {offsets = [0, 7], sizes = [8, 1], strides = [1, 1]} : vector<8x8xf32> to vector<8x1xf32>
      %295 = vector.broadcast %294 : vector<8x1xf32> to vector<8x32xf32>
      %296 = arith.mulf %295, %31 : vector<8x32xf32>
      %297 = arith.addf %275, %278 : vector<8x32xf32>
      %298 = arith.addf %281, %284 : vector<8x32xf32>
      %299 = arith.addf %287, %290 : vector<8x32xf32>
      %300 = arith.addf %293, %296 : vector<8x32xf32>
      %301 = arith.addf %297, %298 : vector<8x32xf32>
      %302 = arith.addf %299, %300 : vector<8x32xf32>
      %303 = arith.addf %301, %302 : vector<8x32xf32>
      %304 = arith.addf %303, %4 : vector<8x32xf32>
      %305 = math.tanh %304 : vector<8x32xf32>
      %cst_18 = arith.constant dense<0.000000e+00> : vector<8x8xf32>
      %306 = tpu.matmul %305, %1, %cst_18 {dimension_numbers = #tpu.dot_dimension_numbers<[1], [0], [0], [1], [0, 0, 1, 1], [], []>} : vector<8x32xf32>, vector<32x8xf32>, vector<8x8xf32> -> vector<8x8xf32>
      %307 = arith.addf %306, %7 : vector<8x8xf32>
      %308 = arith.mulf %39, %307 : vector<8x8xf32>
      %309 = arith.addf %198, %308 : vector<8x8xf32>
      %310 = vector.extract_strided_slice %309 {offsets = [0, 0], sizes = [8, 1], strides = [1, 1]} : vector<8x8xf32> to vector<8x1xf32>
      %311 = vector.broadcast %310 : vector<8x1xf32> to vector<8x32xf32>
      %312 = arith.mulf %311, %10 : vector<8x32xf32>
      %313 = vector.extract_strided_slice %309 {offsets = [0, 1], sizes = [8, 1], strides = [1, 1]} : vector<8x8xf32> to vector<8x1xf32>
      %314 = vector.broadcast %313 : vector<8x1xf32> to vector<8x32xf32>
      %315 = arith.mulf %314, %13 : vector<8x32xf32>
      %316 = vector.extract_strided_slice %309 {offsets = [0, 2], sizes = [8, 1], strides = [1, 1]} : vector<8x8xf32> to vector<8x1xf32>
      %317 = vector.broadcast %316 : vector<8x1xf32> to vector<8x32xf32>
      %318 = arith.mulf %317, %16 : vector<8x32xf32>
      %319 = vector.extract_strided_slice %309 {offsets = [0, 3], sizes = [8, 1], strides = [1, 1]} : vector<8x8xf32> to vector<8x1xf32>
      %320 = vector.broadcast %319 : vector<8x1xf32> to vector<8x32xf32>
      %321 = arith.mulf %320, %19 : vector<8x32xf32>
      %322 = vector.extract_strided_slice %309 {offsets = [0, 4], sizes = [8, 1], strides = [1, 1]} : vector<8x8xf32> to vector<8x1xf32>
      %323 = vector.broadcast %322 : vector<8x1xf32> to vector<8x32xf32>
      %324 = arith.mulf %323, %22 : vector<8x32xf32>
      %325 = vector.extract_strided_slice %309 {offsets = [0, 5], sizes = [8, 1], strides = [1, 1]} : vector<8x8xf32> to vector<8x1xf32>
      %326 = vector.broadcast %325 : vector<8x1xf32> to vector<8x32xf32>
      %327 = arith.mulf %326, %25 : vector<8x32xf32>
      %328 = vector.extract_strided_slice %309 {offsets = [0, 6], sizes = [8, 1], strides = [1, 1]} : vector<8x8xf32> to vector<8x1xf32>
      %329 = vector.broadcast %328 : vector<8x1xf32> to vector<8x32xf32>
      %330 = arith.mulf %329, %28 : vector<8x32xf32>
      %331 = vector.extract_strided_slice %309 {offsets = [0, 7], sizes = [8, 1], strides = [1, 1]} : vector<8x8xf32> to vector<8x1xf32>
      %332 = vector.broadcast %331 : vector<8x1xf32> to vector<8x32xf32>
      %333 = arith.mulf %332, %31 : vector<8x32xf32>
      %334 = arith.addf %312, %315 : vector<8x32xf32>
      %335 = arith.addf %318, %321 : vector<8x32xf32>
      %336 = arith.addf %324, %327 : vector<8x32xf32>
      %337 = arith.addf %330, %333 : vector<8x32xf32>
      %338 = arith.addf %334, %335 : vector<8x32xf32>
      %339 = arith.addf %336, %337 : vector<8x32xf32>
      %340 = arith.addf %338, %339 : vector<8x32xf32>
      %341 = arith.addf %340, %4 : vector<8x32xf32>
      %342 = math.tanh %341 : vector<8x32xf32>
      %cst_19 = arith.constant dense<0.000000e+00> : vector<8x8xf32>
      %343 = tpu.matmul %342, %1, %cst_19 {dimension_numbers = #tpu.dot_dimension_numbers<[1], [0], [0], [1], [0, 0, 1, 1], [], []>} : vector<8x32xf32>, vector<32x8xf32>, vector<8x8xf32> -> vector<8x8xf32>
      %344 = arith.addf %343, %7 : vector<8x8xf32>
      %345 = arith.addf %270, %307 : vector<8x8xf32>
      %cst_20 = arith.constant 2.000000e+00 : f32
      %346 = vector.broadcast %cst_20 : f32 to vector<8x8xf32>
      %347 = arith.mulf %346, %345 : vector<8x8xf32>
      %348 = arith.addf %233, %347 : vector<8x8xf32>
      %349 = arith.addf %348, %344 : vector<8x8xf32>
      %350 = arith.mulf %45, %349 : vector<8x8xf32>
      %351 = arith.addf %198, %350 : vector<8x8xf32>
      %352 = vector.extract_strided_slice %351 {offsets = [0, 0], sizes = [8, 1], strides = [1, 1]} : vector<8x8xf32> to vector<8x1xf32>
      %353 = vector.broadcast %352 : vector<8x1xf32> to vector<8x32xf32>
      %354 = arith.mulf %353, %10 : vector<8x32xf32>
      %355 = vector.extract_strided_slice %351 {offsets = [0, 1], sizes = [8, 1], strides = [1, 1]} : vector<8x8xf32> to vector<8x1xf32>
      %356 = vector.broadcast %355 : vector<8x1xf32> to vector<8x32xf32>
      %357 = arith.mulf %356, %13 : vector<8x32xf32>
      %358 = vector.extract_strided_slice %351 {offsets = [0, 2], sizes = [8, 1], strides = [1, 1]} : vector<8x8xf32> to vector<8x1xf32>
      %359 = vector.broadcast %358 : vector<8x1xf32> to vector<8x32xf32>
      %360 = arith.mulf %359, %16 : vector<8x32xf32>
      %361 = vector.extract_strided_slice %351 {offsets = [0, 3], sizes = [8, 1], strides = [1, 1]} : vector<8x8xf32> to vector<8x1xf32>
      %362 = vector.broadcast %361 : vector<8x1xf32> to vector<8x32xf32>
      %363 = arith.mulf %362, %19 : vector<8x32xf32>
      %364 = vector.extract_strided_slice %351 {offsets = [0, 4], sizes = [8, 1], strides = [1, 1]} : vector<8x8xf32> to vector<8x1xf32>
      %365 = vector.broadcast %364 : vector<8x1xf32> to vector<8x32xf32>
      %366 = arith.mulf %365, %22 : vector<8x32xf32>
      %367 = vector.extract_strided_slice %351 {offsets = [0, 5], sizes = [8, 1], strides = [1, 1]} : vector<8x8xf32> to vector<8x1xf32>
      %368 = vector.broadcast %367 : vector<8x1xf32> to vector<8x32xf32>
      %369 = arith.mulf %368, %25 : vector<8x32xf32>
      %370 = vector.extract_strided_slice %351 {offsets = [0, 6], sizes = [8, 1], strides = [1, 1]} : vector<8x8xf32> to vector<8x1xf32>
      %371 = vector.broadcast %370 : vector<8x1xf32> to vector<8x32xf32>
      %372 = arith.mulf %371, %28 : vector<8x32xf32>
      %373 = vector.extract_strided_slice %351 {offsets = [0, 7], sizes = [8, 1], strides = [1, 1]} : vector<8x8xf32> to vector<8x1xf32>
      %374 = vector.broadcast %373 : vector<8x1xf32> to vector<8x32xf32>
      %375 = arith.mulf %374, %31 : vector<8x32xf32>
      %376 = arith.addf %354, %357 : vector<8x32xf32>
      %377 = arith.addf %360, %363 : vector<8x32xf32>
      %378 = arith.addf %366, %369 : vector<8x32xf32>
      %379 = arith.addf %372, %375 : vector<8x32xf32>
      %380 = arith.addf %376, %377 : vector<8x32xf32>
      %381 = arith.addf %378, %379 : vector<8x32xf32>
      %382 = arith.addf %380, %381 : vector<8x32xf32>
      %383 = arith.addf %382, %4 : vector<8x32xf32>
      %384 = math.tanh %383 : vector<8x32xf32>
      %cst_21 = arith.constant dense<0.000000e+00> : vector<8x8xf32>
      %385 = tpu.matmul %384, %1, %cst_21 {dimension_numbers = #tpu.dot_dimension_numbers<[1], [0], [0], [1], [0, 0, 1, 1], [], []>} : vector<8x32xf32>, vector<32x8xf32>, vector<8x8xf32> -> vector<8x8xf32>
      %386 = arith.addf %385, %7 : vector<8x8xf32>
      %387 = arith.mulf %42, %386 : vector<8x8xf32>
      %388 = arith.addf %351, %387 : vector<8x8xf32>
      %389 = vector.extract_strided_slice %388 {offsets = [0, 0], sizes = [8, 1], strides = [1, 1]} : vector<8x8xf32> to vector<8x1xf32>
      %390 = vector.broadcast %389 : vector<8x1xf32> to vector<8x32xf32>
      %391 = arith.mulf %390, %10 : vector<8x32xf32>
      %392 = vector.extract_strided_slice %388 {offsets = [0, 1], sizes = [8, 1], strides = [1, 1]} : vector<8x8xf32> to vector<8x1xf32>
      %393 = vector.broadcast %392 : vector<8x1xf32> to vector<8x32xf32>
      %394 = arith.mulf %393, %13 : vector<8x32xf32>
      %395 = vector.extract_strided_slice %388 {offsets = [0, 2], sizes = [8, 1], strides = [1, 1]} : vector<8x8xf32> to vector<8x1xf32>
      %396 = vector.broadcast %395 : vector<8x1xf32> to vector<8x32xf32>
      %397 = arith.mulf %396, %16 : vector<8x32xf32>
      %398 = vector.extract_strided_slice %388 {offsets = [0, 3], sizes = [8, 1], strides = [1, 1]} : vector<8x8xf32> to vector<8x1xf32>
      %399 = vector.broadcast %398 : vector<8x1xf32> to vector<8x32xf32>
      %400 = arith.mulf %399, %19 : vector<8x32xf32>
      %401 = vector.extract_strided_slice %388 {offsets = [0, 4], sizes = [8, 1], strides = [1, 1]} : vector<8x8xf32> to vector<8x1xf32>
      %402 = vector.broadcast %401 : vector<8x1xf32> to vector<8x32xf32>
      %403 = arith.mulf %402, %22 : vector<8x32xf32>
      %404 = vector.extract_strided_slice %388 {offsets = [0, 5], sizes = [8, 1], strides = [1, 1]} : vector<8x8xf32> to vector<8x1xf32>
      %405 = vector.broadcast %404 : vector<8x1xf32> to vector<8x32xf32>
      %406 = arith.mulf %405, %25 : vector<8x32xf32>
      %407 = vector.extract_strided_slice %388 {offsets = [0, 6], sizes = [8, 1], strides = [1, 1]} : vector<8x8xf32> to vector<8x1xf32>
      %408 = vector.broadcast %407 : vector<8x1xf32> to vector<8x32xf32>
      %409 = arith.mulf %408, %28 : vector<8x32xf32>
      %410 = vector.extract_strided_slice %388 {offsets = [0, 7], sizes = [8, 1], strides = [1, 1]} : vector<8x8xf32> to vector<8x1xf32>
      %411 = vector.broadcast %410 : vector<8x1xf32> to vector<8x32xf32>
      %412 = arith.mulf %411, %31 : vector<8x32xf32>
      %413 = arith.addf %391, %394 : vector<8x32xf32>
      %414 = arith.addf %397, %400 : vector<8x32xf32>
      %415 = arith.addf %403, %406 : vector<8x32xf32>
      %416 = arith.addf %409, %412 : vector<8x32xf32>
      %417 = arith.addf %413, %414 : vector<8x32xf32>
      %418 = arith.addf %415, %416 : vector<8x32xf32>
      %419 = arith.addf %417, %418 : vector<8x32xf32>
      %420 = arith.addf %419, %4 : vector<8x32xf32>
      %421 = math.tanh %420 : vector<8x32xf32>
      %cst_22 = arith.constant dense<0.000000e+00> : vector<8x8xf32>
      %422 = tpu.matmul %421, %1, %cst_22 {dimension_numbers = #tpu.dot_dimension_numbers<[1], [0], [0], [1], [0, 0, 1, 1], [], []>} : vector<8x32xf32>, vector<32x8xf32>, vector<8x8xf32> -> vector<8x8xf32>
      %423 = arith.addf %422, %7 : vector<8x8xf32>
      %424 = arith.mulf %42, %423 : vector<8x8xf32>
      %425 = arith.addf %351, %424 : vector<8x8xf32>
      %426 = vector.extract_strided_slice %425 {offsets = [0, 0], sizes = [8, 1], strides = [1, 1]} : vector<8x8xf32> to vector<8x1xf32>
      %427 = vector.broadcast %426 : vector<8x1xf32> to vector<8x32xf32>
      %428 = arith.mulf %427, %10 : vector<8x32xf32>
      %429 = vector.extract_strided_slice %425 {offsets = [0, 1], sizes = [8, 1], strides = [1, 1]} : vector<8x8xf32> to vector<8x1xf32>
      %430 = vector.broadcast %429 : vector<8x1xf32> to vector<8x32xf32>
      %431 = arith.mulf %430, %13 : vector<8x32xf32>
      %432 = vector.extract_strided_slice %425 {offsets = [0, 2], sizes = [8, 1], strides = [1, 1]} : vector<8x8xf32> to vector<8x1xf32>
      %433 = vector.broadcast %432 : vector<8x1xf32> to vector<8x32xf32>
      %434 = arith.mulf %433, %16 : vector<8x32xf32>
      %435 = vector.extract_strided_slice %425 {offsets = [0, 3], sizes = [8, 1], strides = [1, 1]} : vector<8x8xf32> to vector<8x1xf32>
      %436 = vector.broadcast %435 : vector<8x1xf32> to vector<8x32xf32>
      %437 = arith.mulf %436, %19 : vector<8x32xf32>
      %438 = vector.extract_strided_slice %425 {offsets = [0, 4], sizes = [8, 1], strides = [1, 1]} : vector<8x8xf32> to vector<8x1xf32>
      %439 = vector.broadcast %438 : vector<8x1xf32> to vector<8x32xf32>
      %440 = arith.mulf %439, %22 : vector<8x32xf32>
      %441 = vector.extract_strided_slice %425 {offsets = [0, 5], sizes = [8, 1], strides = [1, 1]} : vector<8x8xf32> to vector<8x1xf32>
      %442 = vector.broadcast %441 : vector<8x1xf32> to vector<8x32xf32>
      %443 = arith.mulf %442, %25 : vector<8x32xf32>
      %444 = vector.extract_strided_slice %425 {offsets = [0, 6], sizes = [8, 1], strides = [1, 1]} : vector<8x8xf32> to vector<8x1xf32>
      %445 = vector.broadcast %444 : vector<8x1xf32> to vector<8x32xf32>
      %446 = arith.mulf %445, %28 : vector<8x32xf32>
      %447 = vector.extract_strided_slice %425 {offsets = [0, 7], sizes = [8, 1], strides = [1, 1]} : vector<8x8xf32> to vector<8x1xf32>
      %448 = vector.broadcast %447 : vector<8x1xf32> to vector<8x32xf32>
      %449 = arith.mulf %448, %31 : vector<8x32xf32>
      %450 = arith.addf %428, %431 : vector<8x32xf32>
      %451 = arith.addf %434, %437 : vector<8x32xf32>
      %452 = arith.addf %440, %443 : vector<8x32xf32>
      %453 = arith.addf %446, %449 : vector<8x32xf32>
      %454 = arith.addf %450, %451 : vector<8x32xf32>
      %455 = arith.addf %452, %453 : vector<8x32xf32>
      %456 = arith.addf %454, %455 : vector<8x32xf32>
      %457 = arith.addf %456, %4 : vector<8x32xf32>
      %458 = math.tanh %457 : vector<8x32xf32>
      %cst_23 = arith.constant dense<0.000000e+00> : vector<8x8xf32>
      %459 = tpu.matmul %458, %1, %cst_23 {dimension_numbers = #tpu.dot_dimension_numbers<[1], [0], [0], [1], [0, 0, 1, 1], [], []>} : vector<8x32xf32>, vector<32x8xf32>, vector<8x8xf32> -> vector<8x8xf32>
      %460 = arith.addf %459, %7 : vector<8x8xf32>
      %461 = arith.mulf %39, %460 : vector<8x8xf32>
      %462 = arith.addf %351, %461 : vector<8x8xf32>
      %463 = vector.extract_strided_slice %462 {offsets = [0, 0], sizes = [8, 1], strides = [1, 1]} : vector<8x8xf32> to vector<8x1xf32>
      %464 = vector.broadcast %463 : vector<8x1xf32> to vector<8x32xf32>
      %465 = arith.mulf %464, %10 : vector<8x32xf32>
      %466 = vector.extract_strided_slice %462 {offsets = [0, 1], sizes = [8, 1], strides = [1, 1]} : vector<8x8xf32> to vector<8x1xf32>
      %467 = vector.broadcast %466 : vector<8x1xf32> to vector<8x32xf32>
      %468 = arith.mulf %467, %13 : vector<8x32xf32>
      %469 = vector.extract_strided_slice %462 {offsets = [0, 2], sizes = [8, 1], strides = [1, 1]} : vector<8x8xf32> to vector<8x1xf32>
      %470 = vector.broadcast %469 : vector<8x1xf32> to vector<8x32xf32>
      %471 = arith.mulf %470, %16 : vector<8x32xf32>
      %472 = vector.extract_strided_slice %462 {offsets = [0, 3], sizes = [8, 1], strides = [1, 1]} : vector<8x8xf32> to vector<8x1xf32>
      %473 = vector.broadcast %472 : vector<8x1xf32> to vector<8x32xf32>
      %474 = arith.mulf %473, %19 : vector<8x32xf32>
      %475 = vector.extract_strided_slice %462 {offsets = [0, 4], sizes = [8, 1], strides = [1, 1]} : vector<8x8xf32> to vector<8x1xf32>
      %476 = vector.broadcast %475 : vector<8x1xf32> to vector<8x32xf32>
      %477 = arith.mulf %476, %22 : vector<8x32xf32>
      %478 = vector.extract_strided_slice %462 {offsets = [0, 5], sizes = [8, 1], strides = [1, 1]} : vector<8x8xf32> to vector<8x1xf32>
      %479 = vector.broadcast %478 : vector<8x1xf32> to vector<8x32xf32>
      %480 = arith.mulf %479, %25 : vector<8x32xf32>
      %481 = vector.extract_strided_slice %462 {offsets = [0, 6], sizes = [8, 1], strides = [1, 1]} : vector<8x8xf32> to vector<8x1xf32>
      %482 = vector.broadcast %481 : vector<8x1xf32> to vector<8x32xf32>
      %483 = arith.mulf %482, %28 : vector<8x32xf32>
      %484 = vector.extract_strided_slice %462 {offsets = [0, 7], sizes = [8, 1], strides = [1, 1]} : vector<8x8xf32> to vector<8x1xf32>
      %485 = vector.broadcast %484 : vector<8x1xf32> to vector<8x32xf32>
      %486 = arith.mulf %485, %31 : vector<8x32xf32>
      %487 = arith.addf %465, %468 : vector<8x32xf32>
      %488 = arith.addf %471, %474 : vector<8x32xf32>
      %489 = arith.addf %477, %480 : vector<8x32xf32>
      %490 = arith.addf %483, %486 : vector<8x32xf32>
      %491 = arith.addf %487, %488 : vector<8x32xf32>
      %492 = arith.addf %489, %490 : vector<8x32xf32>
      %493 = arith.addf %491, %492 : vector<8x32xf32>
      %494 = arith.addf %493, %4 : vector<8x32xf32>
      %495 = math.tanh %494 : vector<8x32xf32>
      %cst_24 = arith.constant dense<0.000000e+00> : vector<8x8xf32>
      %496 = tpu.matmul %495, %1, %cst_24 {dimension_numbers = #tpu.dot_dimension_numbers<[1], [0], [0], [1], [0, 0, 1, 1], [], []>} : vector<8x32xf32>, vector<32x8xf32>, vector<8x8xf32> -> vector<8x8xf32>
      %497 = arith.addf %496, %7 : vector<8x8xf32>
      %498 = arith.addf %423, %460 : vector<8x8xf32>
      %cst_25 = arith.constant 2.000000e+00 : f32
      %499 = vector.broadcast %cst_25 : f32 to vector<8x8xf32>
      %500 = arith.mulf %499, %498 : vector<8x8xf32>
      %501 = arith.addf %386, %500 : vector<8x8xf32>
      %502 = arith.addf %501, %497 : vector<8x8xf32>
      %503 = arith.mulf %45, %502 : vector<8x8xf32>
      %504 = arith.addf %351, %503 : vector<8x8xf32>
      %505 = vector.extract_strided_slice %504 {offsets = [0, 0], sizes = [8, 1], strides = [1, 1]} : vector<8x8xf32> to vector<8x1xf32>
      %506 = vector.broadcast %505 : vector<8x1xf32> to vector<8x32xf32>
      %507 = arith.mulf %506, %10 : vector<8x32xf32>
      %508 = vector.extract_strided_slice %504 {offsets = [0, 1], sizes = [8, 1], strides = [1, 1]} : vector<8x8xf32> to vector<8x1xf32>
      %509 = vector.broadcast %508 : vector<8x1xf32> to vector<8x32xf32>
      %510 = arith.mulf %509, %13 : vector<8x32xf32>
      %511 = vector.extract_strided_slice %504 {offsets = [0, 2], sizes = [8, 1], strides = [1, 1]} : vector<8x8xf32> to vector<8x1xf32>
      %512 = vector.broadcast %511 : vector<8x1xf32> to vector<8x32xf32>
      %513 = arith.mulf %512, %16 : vector<8x32xf32>
      %514 = vector.extract_strided_slice %504 {offsets = [0, 3], sizes = [8, 1], strides = [1, 1]} : vector<8x8xf32> to vector<8x1xf32>
      %515 = vector.broadcast %514 : vector<8x1xf32> to vector<8x32xf32>
      %516 = arith.mulf %515, %19 : vector<8x32xf32>
      %517 = vector.extract_strided_slice %504 {offsets = [0, 4], sizes = [8, 1], strides = [1, 1]} : vector<8x8xf32> to vector<8x1xf32>
      %518 = vector.broadcast %517 : vector<8x1xf32> to vector<8x32xf32>
      %519 = arith.mulf %518, %22 : vector<8x32xf32>
      %520 = vector.extract_strided_slice %504 {offsets = [0, 5], sizes = [8, 1], strides = [1, 1]} : vector<8x8xf32> to vector<8x1xf32>
      %521 = vector.broadcast %520 : vector<8x1xf32> to vector<8x32xf32>
      %522 = arith.mulf %521, %25 : vector<8x32xf32>
      %523 = vector.extract_strided_slice %504 {offsets = [0, 6], sizes = [8, 1], strides = [1, 1]} : vector<8x8xf32> to vector<8x1xf32>
      %524 = vector.broadcast %523 : vector<8x1xf32> to vector<8x32xf32>
      %525 = arith.mulf %524, %28 : vector<8x32xf32>
      %526 = vector.extract_strided_slice %504 {offsets = [0, 7], sizes = [8, 1], strides = [1, 1]} : vector<8x8xf32> to vector<8x1xf32>
      %527 = vector.broadcast %526 : vector<8x1xf32> to vector<8x32xf32>
      %528 = arith.mulf %527, %31 : vector<8x32xf32>
      %529 = arith.addf %507, %510 : vector<8x32xf32>
      %530 = arith.addf %513, %516 : vector<8x32xf32>
      %531 = arith.addf %519, %522 : vector<8x32xf32>
      %532 = arith.addf %525, %528 : vector<8x32xf32>
      %533 = arith.addf %529, %530 : vector<8x32xf32>
      %534 = arith.addf %531, %532 : vector<8x32xf32>
      %535 = arith.addf %533, %534 : vector<8x32xf32>
      %536 = arith.addf %535, %4 : vector<8x32xf32>
      %537 = math.tanh %536 : vector<8x32xf32>
      %cst_26 = arith.constant dense<0.000000e+00> : vector<8x8xf32>
      %538 = tpu.matmul %537, %1, %cst_26 {dimension_numbers = #tpu.dot_dimension_numbers<[1], [0], [0], [1], [0, 0, 1, 1], [], []>} : vector<8x32xf32>, vector<32x8xf32>, vector<8x8xf32> -> vector<8x8xf32>
      %539 = arith.addf %538, %7 : vector<8x8xf32>
      %540 = arith.mulf %42, %539 : vector<8x8xf32>
      %541 = arith.addf %504, %540 : vector<8x8xf32>
      %542 = vector.extract_strided_slice %541 {offsets = [0, 0], sizes = [8, 1], strides = [1, 1]} : vector<8x8xf32> to vector<8x1xf32>
      %543 = vector.broadcast %542 : vector<8x1xf32> to vector<8x32xf32>
      %544 = arith.mulf %543, %10 : vector<8x32xf32>
      %545 = vector.extract_strided_slice %541 {offsets = [0, 1], sizes = [8, 1], strides = [1, 1]} : vector<8x8xf32> to vector<8x1xf32>
      %546 = vector.broadcast %545 : vector<8x1xf32> to vector<8x32xf32>
      %547 = arith.mulf %546, %13 : vector<8x32xf32>
      %548 = vector.extract_strided_slice %541 {offsets = [0, 2], sizes = [8, 1], strides = [1, 1]} : vector<8x8xf32> to vector<8x1xf32>
      %549 = vector.broadcast %548 : vector<8x1xf32> to vector<8x32xf32>
      %550 = arith.mulf %549, %16 : vector<8x32xf32>
      %551 = vector.extract_strided_slice %541 {offsets = [0, 3], sizes = [8, 1], strides = [1, 1]} : vector<8x8xf32> to vector<8x1xf32>
      %552 = vector.broadcast %551 : vector<8x1xf32> to vector<8x32xf32>
      %553 = arith.mulf %552, %19 : vector<8x32xf32>
      %554 = vector.extract_strided_slice %541 {offsets = [0, 4], sizes = [8, 1], strides = [1, 1]} : vector<8x8xf32> to vector<8x1xf32>
      %555 = vector.broadcast %554 : vector<8x1xf32> to vector<8x32xf32>
      %556 = arith.mulf %555, %22 : vector<8x32xf32>
      %557 = vector.extract_strided_slice %541 {offsets = [0, 5], sizes = [8, 1], strides = [1, 1]} : vector<8x8xf32> to vector<8x1xf32>
      %558 = vector.broadcast %557 : vector<8x1xf32> to vector<8x32xf32>
      %559 = arith.mulf %558, %25 : vector<8x32xf32>
      %560 = vector.extract_strided_slice %541 {offsets = [0, 6], sizes = [8, 1], strides = [1, 1]} : vector<8x8xf32> to vector<8x1xf32>
      %561 = vector.broadcast %560 : vector<8x1xf32> to vector<8x32xf32>
      %562 = arith.mulf %561, %28 : vector<8x32xf32>
      %563 = vector.extract_strided_slice %541 {offsets = [0, 7], sizes = [8, 1], strides = [1, 1]} : vector<8x8xf32> to vector<8x1xf32>
      %564 = vector.broadcast %563 : vector<8x1xf32> to vector<8x32xf32>
      %565 = arith.mulf %564, %31 : vector<8x32xf32>
      %566 = arith.addf %544, %547 : vector<8x32xf32>
      %567 = arith.addf %550, %553 : vector<8x32xf32>
      %568 = arith.addf %556, %559 : vector<8x32xf32>
      %569 = arith.addf %562, %565 : vector<8x32xf32>
      %570 = arith.addf %566, %567 : vector<8x32xf32>
      %571 = arith.addf %568, %569 : vector<8x32xf32>
      %572 = arith.addf %570, %571 : vector<8x32xf32>
      %573 = arith.addf %572, %4 : vector<8x32xf32>
      %574 = math.tanh %573 : vector<8x32xf32>
      %cst_27 = arith.constant dense<0.000000e+00> : vector<8x8xf32>
      %575 = tpu.matmul %574, %1, %cst_27 {dimension_numbers = #tpu.dot_dimension_numbers<[1], [0], [0], [1], [0, 0, 1, 1], [], []>} : vector<8x32xf32>, vector<32x8xf32>, vector<8x8xf32> -> vector<8x8xf32>
      %576 = arith.addf %575, %7 : vector<8x8xf32>
      %577 = arith.mulf %42, %576 : vector<8x8xf32>
      %578 = arith.addf %504, %577 : vector<8x8xf32>
      %579 = vector.extract_strided_slice %578 {offsets = [0, 0], sizes = [8, 1], strides = [1, 1]} : vector<8x8xf32> to vector<8x1xf32>
      %580 = vector.broadcast %579 : vector<8x1xf32> to vector<8x32xf32>
      %581 = arith.mulf %580, %10 : vector<8x32xf32>
      %582 = vector.extract_strided_slice %578 {offsets = [0, 1], sizes = [8, 1], strides = [1, 1]} : vector<8x8xf32> to vector<8x1xf32>
      %583 = vector.broadcast %582 : vector<8x1xf32> to vector<8x32xf32>
      %584 = arith.mulf %583, %13 : vector<8x32xf32>
      %585 = vector.extract_strided_slice %578 {offsets = [0, 2], sizes = [8, 1], strides = [1, 1]} : vector<8x8xf32> to vector<8x1xf32>
      %586 = vector.broadcast %585 : vector<8x1xf32> to vector<8x32xf32>
      %587 = arith.mulf %586, %16 : vector<8x32xf32>
      %588 = vector.extract_strided_slice %578 {offsets = [0, 3], sizes = [8, 1], strides = [1, 1]} : vector<8x8xf32> to vector<8x1xf32>
      %589 = vector.broadcast %588 : vector<8x1xf32> to vector<8x32xf32>
      %590 = arith.mulf %589, %19 : vector<8x32xf32>
      %591 = vector.extract_strided_slice %578 {offsets = [0, 4], sizes = [8, 1], strides = [1, 1]} : vector<8x8xf32> to vector<8x1xf32>
      %592 = vector.broadcast %591 : vector<8x1xf32> to vector<8x32xf32>
      %593 = arith.mulf %592, %22 : vector<8x32xf32>
      %594 = vector.extract_strided_slice %578 {offsets = [0, 5], sizes = [8, 1], strides = [1, 1]} : vector<8x8xf32> to vector<8x1xf32>
      %595 = vector.broadcast %594 : vector<8x1xf32> to vector<8x32xf32>
      %596 = arith.mulf %595, %25 : vector<8x32xf32>
      %597 = vector.extract_strided_slice %578 {offsets = [0, 6], sizes = [8, 1], strides = [1, 1]} : vector<8x8xf32> to vector<8x1xf32>
      %598 = vector.broadcast %597 : vector<8x1xf32> to vector<8x32xf32>
      %599 = arith.mulf %598, %28 : vector<8x32xf32>
      %600 = vector.extract_strided_slice %578 {offsets = [0, 7], sizes = [8, 1], strides = [1, 1]} : vector<8x8xf32> to vector<8x1xf32>
      %601 = vector.broadcast %600 : vector<8x1xf32> to vector<8x32xf32>
      %602 = arith.mulf %601, %31 : vector<8x32xf32>
      %603 = arith.addf %581, %584 : vector<8x32xf32>
      %604 = arith.addf %587, %590 : vector<8x32xf32>
      %605 = arith.addf %593, %596 : vector<8x32xf32>
      %606 = arith.addf %599, %602 : vector<8x32xf32>
      %607 = arith.addf %603, %604 : vector<8x32xf32>
      %608 = arith.addf %605, %606 : vector<8x32xf32>
      %609 = arith.addf %607, %608 : vector<8x32xf32>
      %610 = arith.addf %609, %4 : vector<8x32xf32>
      %611 = math.tanh %610 : vector<8x32xf32>
      %cst_28 = arith.constant dense<0.000000e+00> : vector<8x8xf32>
      %612 = tpu.matmul %611, %1, %cst_28 {dimension_numbers = #tpu.dot_dimension_numbers<[1], [0], [0], [1], [0, 0, 1, 1], [], []>} : vector<8x32xf32>, vector<32x8xf32>, vector<8x8xf32> -> vector<8x8xf32>
      %613 = arith.addf %612, %7 : vector<8x8xf32>
      %614 = arith.mulf %39, %613 : vector<8x8xf32>
      %615 = arith.addf %504, %614 : vector<8x8xf32>
      %616 = vector.extract_strided_slice %615 {offsets = [0, 0], sizes = [8, 1], strides = [1, 1]} : vector<8x8xf32> to vector<8x1xf32>
      %617 = vector.broadcast %616 : vector<8x1xf32> to vector<8x32xf32>
      %618 = arith.mulf %617, %10 : vector<8x32xf32>
      %619 = vector.extract_strided_slice %615 {offsets = [0, 1], sizes = [8, 1], strides = [1, 1]} : vector<8x8xf32> to vector<8x1xf32>
      %620 = vector.broadcast %619 : vector<8x1xf32> to vector<8x32xf32>
      %621 = arith.mulf %620, %13 : vector<8x32xf32>
      %622 = vector.extract_strided_slice %615 {offsets = [0, 2], sizes = [8, 1], strides = [1, 1]} : vector<8x8xf32> to vector<8x1xf32>
      %623 = vector.broadcast %622 : vector<8x1xf32> to vector<8x32xf32>
      %624 = arith.mulf %623, %16 : vector<8x32xf32>
      %625 = vector.extract_strided_slice %615 {offsets = [0, 3], sizes = [8, 1], strides = [1, 1]} : vector<8x8xf32> to vector<8x1xf32>
      %626 = vector.broadcast %625 : vector<8x1xf32> to vector<8x32xf32>
      %627 = arith.mulf %626, %19 : vector<8x32xf32>
      %628 = vector.extract_strided_slice %615 {offsets = [0, 4], sizes = [8, 1], strides = [1, 1]} : vector<8x8xf32> to vector<8x1xf32>
      %629 = vector.broadcast %628 : vector<8x1xf32> to vector<8x32xf32>
      %630 = arith.mulf %629, %22 : vector<8x32xf32>
      %631 = vector.extract_strided_slice %615 {offsets = [0, 5], sizes = [8, 1], strides = [1, 1]} : vector<8x8xf32> to vector<8x1xf32>
      %632 = vector.broadcast %631 : vector<8x1xf32> to vector<8x32xf32>
      %633 = arith.mulf %632, %25 : vector<8x32xf32>
      %634 = vector.extract_strided_slice %615 {offsets = [0, 6], sizes = [8, 1], strides = [1, 1]} : vector<8x8xf32> to vector<8x1xf32>
      %635 = vector.broadcast %634 : vector<8x1xf32> to vector<8x32xf32>
      %636 = arith.mulf %635, %28 : vector<8x32xf32>
      %637 = vector.extract_strided_slice %615 {offsets = [0, 7], sizes = [8, 1], strides = [1, 1]} : vector<8x8xf32> to vector<8x1xf32>
      %638 = vector.broadcast %637 : vector<8x1xf32> to vector<8x32xf32>
      %639 = arith.mulf %638, %31 : vector<8x32xf32>
      %640 = arith.addf %618, %621 : vector<8x32xf32>
      %641 = arith.addf %624, %627 : vector<8x32xf32>
      %642 = arith.addf %630, %633 : vector<8x32xf32>
      %643 = arith.addf %636, %639 : vector<8x32xf32>
      %644 = arith.addf %640, %641 : vector<8x32xf32>
      %645 = arith.addf %642, %643 : vector<8x32xf32>
      %646 = arith.addf %644, %645 : vector<8x32xf32>
      %647 = arith.addf %646, %4 : vector<8x32xf32>
      %648 = math.tanh %647 : vector<8x32xf32>
      %cst_29 = arith.constant dense<0.000000e+00> : vector<8x8xf32>
      %649 = tpu.matmul %648, %1, %cst_29 {dimension_numbers = #tpu.dot_dimension_numbers<[1], [0], [0], [1], [0, 0, 1, 1], [], []>} : vector<8x32xf32>, vector<32x8xf32>, vector<8x8xf32> -> vector<8x8xf32>
      %650 = arith.addf %649, %7 : vector<8x8xf32>
      %651 = arith.addf %576, %613 : vector<8x8xf32>
      %cst_30 = arith.constant 2.000000e+00 : f32
      %652 = vector.broadcast %cst_30 : f32 to vector<8x8xf32>
      %653 = arith.mulf %652, %651 : vector<8x8xf32>
      %654 = arith.addf %539, %653 : vector<8x8xf32>
      %655 = arith.addf %654, %650 : vector<8x8xf32>
      %656 = arith.mulf %45, %655 : vector<8x8xf32>
      %657 = arith.addf %504, %656 : vector<8x8xf32>
      %658 = vector.extract_strided_slice %657 {offsets = [0, 0], sizes = [1, 8], strides = [1, 1]} : vector<8x8xf32> to vector<1x8xf32>
      %c1_i32_31 = arith.constant 1 : i32
      %659 = arith.addi %arg9, %c1_i32_31 : i32
      %660 = arith.index_cast %659 : i32 to index
      %c0_32 = arith.constant 0 : index
      %661 = vector.load %arg8[%660, %c0_32] : memref<8x8xf32, #tpu.memory_space<vmem>>, vector<1x8xf32>
      tpu.vector_store %arg8[%660, %c0_32], %658 {strides = array<i32>} : memref<8x8xf32, #tpu.memory_space<vmem>>, vector<1x8xf32>,
      scf.yield %657 : vector<8x8xf32>
    }
    %c7_i32_11 = arith.constant 7 : i32
    return
  }
}

</mosaic_0001>

<llo_original>
// kernel: tpu_custom_call.1
$region0: #{tpu_custom_call.1}
  #allocation0 [shape = 'u32[]', space=smem, size = 0x4, offset = 0x4, fixed_abs, tag = 'smem constant byte address 0x4 - core index']
  #allocation1 [shape = 'u32[144,128]{1,0:T(1,128)}', space=vmem, size = 0x12000, scoped, tag = 'internal scratch']
  %s0 = inlined_call_operand.vmem [shape: f32[7], index: 0, kind: input, shape index: {}]
  %s1 = inlined_call_operand.vmem [shape: f32[7], index: 1, kind: input, shape index: {}]
  %s2 = inlined_call_operand.vmem [shape: f32[7], index: 2, kind: input, shape index: {}]
  %s3 = inlined_call_operand.vmem [shape: f32[8,8], index: 3, kind: input, shape index: {}]
  %s4 = inlined_call_operand.vmem [shape: f32[8,32], index: 4, kind: input, shape index: {}]
  %s5 = inlined_call_operand.vmem [shape: f32[1,32], index: 5, kind: input, shape index: {}]
  %s6 = inlined_call_operand.vmem [shape: f32[32,8], index: 6, kind: input, shape index: {}]
  %s7 = inlined_call_operand.vmem [shape: f32[1,8], index: 7, kind: input, shape index: {}]
  %s8 = inlined_call_operand.hbm [shape: f32[8,8], index: 8, kind: output, shape index: {}]
  %s9 = sld [smem:[#allocation0]]
  $region61: #{tpu_custom_call.1} parent=0
    _
  %s11 = ssub.s32 1, %s9
  %s12 = scalar_select 0, %s11, %s9
  $region1: #{tpu_custom_call.1} parent=0
    #allocation2 [shape = 'u8[512]{0}', space=smem, size = 0x200, scoped, tag = 'input window, operand 0, single buffered']
    #allocation3 [shape = 's32[1]{0}', space=sflag, size = 0x4, scoped, tag = 'scoped memory for tpu_custom_call.1']
    #allocation4 [shape = 's32[1]{0}', space=sflag, size = 0x4, scoped, tag = 'scoped memory for tpu_custom_call.1']
    #allocation5 [shape = 'u8[512]{0}', space=smem, size = 0x200, scoped, tag = 'input window, operand 1, single buffered']
    #allocation6 [shape = 's32[1]{0}', space=sflag, size = 0x4, scoped, tag = 'scoped memory for tpu_custom_call.1']
    #allocation7 [shape = 'u8[512]{0}', space=smem, size = 0x200, scoped, tag = 'input window, operand 2, single buffered']
    #allocation8 [shape = 'u8[4096]{0}', space=vmem, size = 0x1000, scoped, tag = 'output window, operand 0, single buffered']
    %13 = vsyncpa [#allocation4], 0
    %14 = vsyncpa [#allocation6], 0
    %15 = vsyncpa [#allocation3], 0
    // Predicated region
    $region2: #{tpu_custom_call.1} parent=1 // pred_check
      _
    $region3: #{tpu_custom_call.1} parent=1 // pred_check_branch
      %17 = sbr.rel (0) target = $region5
    $region4: #{tpu_custom_call.1} parent=1 // pred_region
      %s19 = ssub.s32 16, 16
      %20 = vsyncadd [#allocation4], %s19
      %s22 = sshll.u32 %s0, 4
      %s23 = int_to_ptr.vmem [resolvable:$true] %s22
      %25 = dma.vmem_to_smem %s23, 16, [#allocation2], [#allocation4]
    $region5: #{tpu_custom_call.1} parent=1 // pred_fallthru
      _
    // Predicated region
    $region6: #{tpu_custom_call.1} parent=1 // pred_check
      _
    $region7: #{tpu_custom_call.1} parent=1 // pred_check_branch
      %27 = sbr.rel (0) target = $region9
    $region8: #{tpu_custom_call.1} parent=1 // pred_region
      %s29 = ssub.s32 16, 16
      %30 = vsyncadd [#allocation6], %s29
      %s32 = sshll.u32 %s1, 4
      %s33 = int_to_ptr.vmem [resolvable:$true] %s32
      %35 = dma.vmem_to_smem %s33, 16, [#allocation5], [#allocation6]
    $region9: #{tpu_custom_call.1} parent=1 // pred_fallthru
      _
    // Predicated region
    $region10: #{tpu_custom_call.1} parent=1 // pred_check
      _
    $region11: #{tpu_custom_call.1} parent=1 // pred_check_branch
      %37 = sbr.rel (0) target = $region13
    $region12: #{tpu_custom_call.1} parent=1 // pred_region
      %s39 = ssub.s32 16, 16
      %40 = vsyncadd [#allocation6], %s39
      %s42 = sshll.u32 %s2, 4
      %s43 = int_to_ptr.vmem [resolvable:$true] %s42
      %45 = dma.vmem_to_smem %s43, 16, [#allocation7], [#allocation6]
    $region13: #{tpu_custom_call.1} parent=1 // pred_fallthru
      _
    // Predicated region
    $region14: #{tpu_custom_call.1} parent=1 // pred_check
      _
    $region15: #{tpu_custom_call.1} parent=1 // pred_check_branch
      %47 = sbr.rel (0) target = $region17
    $region16: #{tpu_custom_call.1} parent=1 // pred_region
      _
    $region17: #{tpu_custom_call.1} parent=1 // pred_fallthru
      _
    // Predicated region
    $region18: #{tpu_custom_call.1} parent=1 // pred_check
      _
    $region19: #{tpu_custom_call.1} parent=1 // pred_check_branch
      %49 = sbr.rel (0) target = $region21
    $region20: #{tpu_custom_call.1} parent=1 // pred_region
      _
    $region21: #{tpu_custom_call.1} parent=1 // pred_fallthru
      _
    // Predicated region
    $region22: #{tpu_custom_call.1} parent=1 // pred_check
      _
    $region23: #{tpu_custom_call.1} parent=1 // pred_check_branch
      %51 = sbr.rel (0) target = $region25
    $region24: #{tpu_custom_call.1} parent=1 // pred_region
      _
    $region25: #{tpu_custom_call.1} parent=1 // pred_fallthru
      _
    // Predicated region
    $region26: #{tpu_custom_call.1} parent=1 // pred_check
      _
    $region27: #{tpu_custom_call.1} parent=1 // pred_check_branch
      %53 = sbr.rel (0) target = $region29
    $region28: #{tpu_custom_call.1} parent=1 // pred_region
      _
    $region29: #{tpu_custom_call.1} parent=1 // pred_fallthru
      _
    // Predicated region
    $region30: #{tpu_custom_call.1} parent=1 // pred_check
      _
    $region31: #{tpu_custom_call.1} parent=1 // pred_check_branch
      %55 = sbr.rel (0) target = $region33
    $region32: #{tpu_custom_call.1} parent=1 // pred_region
      _
    $region33: #{tpu_custom_call.1} parent=1 // pred_fallthru
      _
    // Predicated region
    $region34: #{tpu_custom_call.1} parent=1 // pred_check
      _
    $region35: #{tpu_custom_call.1} parent=1 // pred_check_branch
      %57 = sbr.rel (0) target = $region37
    $region36: #{tpu_custom_call.1} parent=1 // pred_region
      %58 = dma.done [#allocation4], 16
    $region37: #{tpu_custom_call.1} parent=1 // pred_fallthru
      _
    // Predicated region
    $region38: #{tpu_custom_call.1} parent=1 // pred_check
      _
    $region39: #{tpu_custom_call.1} parent=1 // pred_check_branch
      %60 = sbr.rel (0) target = $region41
    $region40: #{tpu_custom_call.1} parent=1 // pred_region
      %61 = dma.done [#allocation6], 16
    $region41: #{tpu_custom_call.1} parent=1 // pred_fallthru
      _
    // Predicated region
    $region42: #{tpu_custom_call.1} parent=1 // pred_check
      _
    $region43: #{tpu_custom_call.1} parent=1 // pred_check_branch
      %63 = sbr.rel (0) target = $region45
    $region44: #{tpu_custom_call.1} parent=1 // pred_region
      %64 = dma.done [#allocation6], 16
    $region45: #{tpu_custom_call.1} parent=1 // pred_fallthru
      _
    %65 = sfence
    %v66 = vld [vmem:[%s4] sm:$0xff]
    %v67 = vld [vmem:[%s6] sm:$0xff]
    %v68 = vld [vmem:[%s6 + $0x8] sm:$0xff]
    %v69 = vld [vmem:[%s6 + $0x10] sm:$0xff]
    %v70 = vld [vmem:[%s6 + $0x18] sm:$0xff]
    %v71 = vld [vmem:[%s5] sm:$0x1]
    %v73 = vlaneseq
    %v74 = vshrl.u32 %v73, 7
    %v75 = vsub.s32 0, %v74
    %v76 = vrot.slane %v71, %v75
    %v78 = vld [vmem:[%s7] sm:$0x1]
    %v80 = vlaneseq
    %v81 = vshrl.u32 %v80, 7
    %v82 = vsub.s32 0, %v81
    %v83 = vrot.slane %v78, %v82
    %v85 = vlaneseq
    %v86 = vshrl.u32 %v85, 7
    %v87 = vsub.s32 0, %v86
    %v88 = vrot.slane %v66, %v87
    %v89 = vlaneseq
    %v90 = vshrl.u32 %v89, 7
    %v91 = vsub.s32 1, %v90
    %v92 = vrot.slane %v66, %v91
    %v93 = vlaneseq
    %v94 = vshrl.u32 %v93, 7
    %v95 = vsub.s32 2, %v94
    %v96 = vrot.slane %v66, %v95
    %v97 = vlaneseq
    %v98 = vshrl.u32 %v97, 7
    %v99 = vsub.s32 3, %v98
    %v100 = vrot.slane %v66, %v99
    %v101 = vlaneseq
    %v102 = vshrl.u32 %v101, 7
    %v103 = vsub.s32 4, %v102
    %v104 = vrot.slane %v66, %v103
    %v105 = vlaneseq
    %v106 = vshrl.u32 %v105, 7
    %v107 = vsub.s32 5, %v106
    %v108 = vrot.slane %v66, %v107
    %v109 = vlaneseq
    %v110 = vshrl.u32 %v109, 7
    %v111 = vsub.s32 6, %v110
    %v112 = vrot.slane %v66, %v111
    %v113 = vlaneseq
    %v114 = vshrl.u32 %v113, 7
    %v115 = vsub.s32 7, %v114
    %v116 = vrot.slane %v66, %v115
    %v117 = vld [vmem:[%s3] sm:$0xff]
    %vm118 = vcmask 57344
    %119 = vst.msk [vmem:[#allocation8] sm:$0x1] %vm118, %v117
    loop: start=0, step=1, limit=7
    $region46: #{tpu_custom_call.1} parent=1 // loop_pre_header
      _
    $region47: #{tpu_custom_call.1} parent=1 // loop_header
      %s121 = sphi 0, %s125
      %p122 = scmp.ge.s32.totalorder %s121, 7
      %v126 = vphi %v117, %v2149
    $region48: #{tpu_custom_call.1} parent=1 // loop_header_branch
      %124 = sbr.rel (%p122) target = $region52
    $region49: #{tpu_custom_call.1} parent=1 // loop_body
      %s127 = sld [smem:[#allocation2 + %s121]]
      %v128 = vstv %s127
      %s129 = sld [smem:[#allocation5 + %s121]]
      %v130 = vstv %s129
      %s131 = sld [smem:[#allocation7 + %s121]]
      %v132 = vstv %s131
      %134 = vset.pattern.permute.xlu0 0
      %135 = vperm.xlu0 %134, %v126
      %v136 = vpop.permute.xlu0 %135
      %v138 = vmul.f32 %v136, %v88
      %139 = vset.pattern.permute.xlu0 1
      %140 = vperm.xlu0 %139, %v126
      %v141 = vpop.permute.xlu0 %140
      %v143 = vmul.f32 %v141, %v92
      %144 = vset.pattern.permute.xlu0 2
      %145 = vperm.xlu0 %144, %v126
      %v146 = vpop.permute.xlu0 %145
      %v148 = vmul.f32 %v146, %v96
      %149 = vset.pattern.permute.xlu0 3
      %150 = vperm.xlu0 %149, %v126
      %v151 = vpop.permute.xlu0 %150
      %v153 = vmul.f32 %v151, %v100
      %154 = vset.pattern.permute.xlu0 4
      %155 = vperm.xlu0 %154, %v126
      %v156 = vpop.permute.xlu0 %155
      %v158 = vmul.f32 %v156, %v104
      %159 = vset.pattern.permute.xlu0 5
      %160 = vperm.xlu0 %159, %v126
      %v161 = vpop.permute.xlu0 %160
      %v163 = vmul.f32 %v161, %v108
      %164 = vset.pattern.permute.xlu0 6
      %165 = vperm.xlu0 %164, %v126
      %v166 = vpop.permute.xlu0 %165
      %v168 = vmul.f32 %v166, %v112
      %169 = vset.pattern.permute.xlu0 7
      %170 = vperm.xlu0 %169, %v126
      %v171 = vpop.permute.xlu0 %170
      %v173 = vmul.f32 %v171, %v116
      %v174 = vadd.f32 %v138, %v143
      %v175 = vadd.f32 %v148, %v153
      %v176 = vadd.f32 %v158, %v163
      %v177 = vadd.f32 %v168, %v173
      %v178 = vadd.f32 %v174, %v175
      %v179 = vadd.f32 %v176, %v177
      %v180 = vadd.f32 %v178, %v179
      %v181 = vadd.f32 %v180, %v76
      %v182 = vtanh.pop %v181
      %vm183 = vcmask 261120
      %v185 = vsel %vm183, %v182, 0
      %187 = vmatprep.subr.mxu0 0.0
      %188 = vmatpush1.msra.mxu0 %v67
      %189 = vmatprep.subr.mxu0 0.0
      %190 = vmatpush1.msra.mxu0 %v68
      %191 = vmatprep.subr.mxu0 0.0
      %192 = vmatpush1.msra.mxu0 %v69
      %193 = vmatprep.subr.mxu0 0.0
      %194 = vmatpush1.msra.mxu0 %v70
      %195 = vmatprep.subr.mxu0 0.0
      %196 = vmatpush1.msra.mxu0 0.0
      %197 = vmatprep.subr.mxu0 0.0
      %198 = vmatpush1.msra.mxu0 0.0
      %199 = vmatprep.subr.mxu0 0.0
      %200 = vmatpush1.msra.mxu0 0.0
      %201 = vmatprep.subr.mxu0 0.0
      %202 = vmatpush1.msra.mxu0 0.0
      %203 = vmatprep.subr.mxu0 0.0
      %204 = vmatpush1.msra.mxu0 0.0
      %205 = vmatprep.subr.mxu0 0.0
      %206 = vmatpush1.msra.mxu0 0.0
      %207 = vmatprep.subr.mxu0 0.0
      %208 = vmatpush1.msra.mxu0 0.0
      %209 = vmatprep.subr.mxu0 0.0
      %210 = vmatpush1.msra.mxu0 0.0
      %211 = vmatprep.subr.mxu0 0.0
      %212 = vmatpush1.msra.mxu0 0.0
      %213 = vmatprep.subr.mxu0 0.0
      %214 = vmatpush1.msra.mxu0 0.0
      %215 = vmatprep.subr.mxu0 0.0
      %216 = vmatpush1.msra.mxu0 0.0
      %217 = vmatprep.subr.mxu0 0.0
      %218 = vmatpush1.msra.mxu0 0.0
      %219 = vmatprep.subr.mxu0 0.0
      %220 = vmatpush1.msra.mxu0 0.0
      %221 = vmatprep.subr.mxu0 0.0
      %222 = vmatpush1.msra.mxu0 0.0
      %223 = vmatprep.subr.mxu0 0.0
      %224 = vmatpush1.msra.mxu0 0.0
      %225 = vmatprep.subr.mxu0 0.0
      %226 = vmatpush1.msra.mxu0 0.0
      %227 = vmatprep.subr.mxu0 0.0
      %228 = vmatpush1.msra.mxu0 0.0
      %229 = vmatprep.subr.mxu0 0.0
      %230 = vmatpush1.msra.mxu0 0.0
      %231 = vmatprep.subr.mxu0 0.0
      %232 = vmatpush1.msra.mxu0 0.0
      %233 = vmatprep.subr.mxu0 0.0
      %234 = vmatpush1.msra.mxu0 0.0
      %235 = vmatprep.subr.mxu0 0.0
      %236 = vmatpush1.msra.mxu0 0.0
      %237 = vmatprep.subr.mxu0 0.0
      %238 = vmatpush1.msra.mxu0 0.0
      %239 = vmatprep.subr.mxu0 0.0
      %240 = vmatpush1.msra.mxu0 0.0
      %241 = vmatprep.subr.mxu0 0.0
      %242 = vmatpush1.msra.mxu0 0.0
      %243 = vmatprep.subr.mxu0 0.0
      %244 = vmatpush1.msra.mxu0 0.0
      %245 = vmatprep.subr.mxu0 0.0
      %246 = vmatpush1.msra.mxu0 0.0
      %247 = vmatprep.subr.mxu0 0.0
      %248 = vmatpush1.msra.mxu0 0.0
      %249 = vmatprep.subr.mxu0 0.0
      %250 = vmatpush1.msra.mxu0 0.0
      %251 = vmatprep.mubr.f32.mxu0 0.0
      %252 = vmatmul.mubr.f32.gmra.mrb[0].mxu0 %v185
      %v253 = vpop.f32.mrb[0].mxu0
      %v254 = vadd.f32 %v83, %v253
      %v255 = vpop.f32.mrb[0].mxu0
      %256 = vdwg.mxu0
      %v257 = vmul.f32 %v130, %v254
      %v258 = vadd.f32 %v126, %v257
      %260 = vset.pattern.permute.xlu0 0
      %261 = vperm.xlu0 %260, %v258
      %v262 = vpop.permute.xlu0 %261
      %v264 = vmul.f32 %v262, %v88
      %265 = vset.pattern.permute.xlu0 1
      %266 = vperm.xlu0 %265, %v258
      %v267 = vpop.permute.xlu0 %266
      %v269 = vmul.f32 %v267, %v92
      %270 = vset.pattern.permute.xlu0 2
      %271 = vperm.xlu0 %270, %v258
      %v272 = vpop.permute.xlu0 %271
      %v274 = vmul.f32 %v272, %v96
      %275 = vset.pattern.permute.xlu0 3
      %276 = vperm.xlu0 %275, %v258
      %v277 = vpop.permute.xlu0 %276
      %v279 = vmul.f32 %v277, %v100
      %280 = vset.pattern.permute.xlu0 4
      %281 = vperm.xlu0 %280, %v258
      %v282 = vpop.permute.xlu0 %281
      %v284 = vmul.f32 %v282, %v104
      %285 = vset.pattern.permute.xlu0 5
      %286 = vperm.xlu0 %285, %v258
      %v287 = vpop.permute.xlu0 %286
      %v289 = vmul.f32 %v287, %v108
      %290 = vset.pattern.permute.xlu0 6
      %291 = vperm.xlu0 %290, %v258
      %v292 = vpop.permute.xlu0 %291
      %v294 = vmul.f32 %v292, %v112
      %295 = vset.pattern.permute.xlu0 7
      %296 = vperm.xlu0 %295, %v258
      %v297 = vpop.permute.xlu0 %296
      %v299 = vmul.f32 %v297, %v116
      %v300 = vadd.f32 %v264, %v269
      %v301 = vadd.f32 %v274, %v279
      %v302 = vadd.f32 %v284, %v289
      %v303 = vadd.f32 %v294, %v299
      %v304 = vadd.f32 %v300, %v301
      %v305 = vadd.f32 %v302, %v303
      %v306 = vadd.f32 %v304, %v305
      %v307 = vadd.f32 %v306, %v76
      %v308 = vtanh.pop %v307
      %v310 = vsel %vm183, %v308, 0
      %312 = vmatprep.subr.mxu0 0.0
      %313 = vmatpush1.msra.mxu0 %v67
      %314 = vmatprep.subr.mxu0 0.0
      %315 = vmatpush1.msra.mxu0 %v68
      %316 = vmatprep.subr.mxu0 0.0
      %317 = vmatpush1.msra.mxu0 %v69
      %318 = vmatprep.subr.mxu0 0.0
      %319 = vmatpush1.msra.mxu0 %v70
      %320 = vmatprep.subr.mxu0 0.0
      %321 = vmatpush1.msra.mxu0 0.0
      %322 = vmatprep.subr.mxu0 0.0
      %323 = vmatpush1.msra.mxu0 0.0
      %324 = vmatprep.subr.mxu0 0.0
      %325 = vmatpush1.msra.mxu0 0.0
      %326 = vmatprep.subr.mxu0 0.0
      %327 = vmatpush1.msra.mxu0 0.0
      %328 = vmatprep.subr.mxu0 0.0
      %329 = vmatpush1.msra.mxu0 0.0
      %330 = vmatprep.subr.mxu0 0.0
      %331 = vmatpush1.msra.mxu0 0.0
      %332 = vmatprep.subr.mxu0 0.0
      %333 = vmatpush1.msra.mxu0 0.0
      %334 = vmatprep.subr.mxu0 0.0
      %335 = vmatpush1.msra.mxu0 0.0
      %336 = vmatprep.subr.mxu0 0.0
      %337 = vmatpush1.msra.mxu0 0.0
      %338 = vmatprep.subr.mxu0 0.0
      %339 = vmatpush1.msra.mxu0 0.0
      %340 = vmatprep.subr.mxu0 0.0
      %341 = vmatpush1.msra.mxu0 0.0
      %342 = vmatprep.subr.mxu0 0.0
      %343 = vmatpush1.msra.mxu0 0.0
      %344 = vmatprep.subr.mxu0 0.0
      %345 = vmatpush1.msra.mxu0 0.0
      %346 = vmatprep.subr.mxu0 0.0
      %347 = vmatpush1.msra.mxu0 0.0
      %348 = vmatprep.subr.mxu0 0.0
      %349 = vmatpush1.msra.mxu0 0.0
      %350 = vmatprep.subr.mxu0 0.0
      %351 = vmatpush1.msra.mxu0 0.0
      %352 = vmatprep.subr.mxu0 0.0
      %353 = vmatpush1.msra.mxu0 0.0
      %354 = vmatprep.subr.mxu0 0.0
      %355 = vmatpush1.msra.mxu0 0.0
      %356 = vmatprep.subr.mxu0 0.0
      %357 = vmatpush1.msra.mxu0 0.0
      %358 = vmatprep.subr.mxu0 0.0
      %359 = vmatpush1.msra.mxu0 0.0
      %360 = vmatprep.subr.mxu0 0.0
      %361 = vmatpush1.msra.mxu0 0.0
      %362 = vmatprep.subr.mxu0 0.0
      %363 = vmatpush1.msra.mxu0 0.0
      %364 = vmatprep.subr.mxu0 0.0
      %365 = vmatpush1.msra.mxu0 0.0
      %366 = vmatprep.subr.mxu0 0.0
      %367 = vmatpush1.msra.mxu0 0.0
      %368 = vmatprep.subr.mxu0 0.0
      %369 = vmatpush1.msra.mxu0 0.0
      %370 = vmatprep.subr.mxu0 0.0
      %371 = vmatpush1.msra.mxu0 0.0
      %372 = vmatprep.subr.mxu0 0.0
      %373 = vmatpush1.msra.mxu0 0.0
      %374 = vmatprep.subr.mxu0 0.0
      %375 = vmatpush1.msra.mxu0 0.0
      %376 = vmatprep.mubr.f32.mxu0 0.0
      %377 = vmatmul.mubr.f32.gmra.mrb[0].mxu0 %v310
      %v378 = vpop.f32.mrb[0].mxu0
      %v379 = vadd.f32 %v83, %v378
      %v380 = vpop.f32.mrb[0].mxu0
      %381 = vdwg.mxu0
      %v382 = vmul.f32 %v130, %v379
      %v383 = vadd.f32 %v126, %v382
      %385 = vset.pattern.permute.xlu0 0
      %386 = vperm.xlu0 %385, %v383
      %v387 = vpop.permute.xlu0 %386
      %v389 = vmul.f32 %v387, %v88
      %390 = vset.pattern.permute.xlu0 1
      %391 = vperm.xlu0 %390, %v383
      %v392 = vpop.permute.xlu0 %391
      %v394 = vmul.f32 %v392, %v92
      %395 = vset.pattern.permute.xlu0 2
      %396 = vperm.xlu0 %395, %v383
      %v397 = vpop.permute.xlu0 %396
      %v399 = vmul.f32 %v397, %v96
      %400 = vset.pattern.permute.xlu0 3
      %401 = vperm.xlu0 %400, %v383
      %v402 = vpop.permute.xlu0 %401
      %v404 = vmul.f32 %v402, %v100
      %405 = vset.pattern.permute.xlu0 4
      %406 = vperm.xlu0 %405, %v383
      %v407 = vpop.permute.xlu0 %406
      %v409 = vmul.f32 %v407, %v104
      %410 = vset.pattern.permute.xlu0 5
      %411 = vperm.xlu0 %410, %v383
      %v412 = vpop.permute.xlu0 %411
      %v414 = vmul.f32 %v412, %v108
      %415 = vset.pattern.permute.xlu0 6
      %416 = vperm.xlu0 %415, %v383
      %v417 = vpop.permute.xlu0 %416
      %v419 = vmul.f32 %v417, %v112
      %420 = vset.pattern.permute.xlu0 7
      %421 = vperm.xlu0 %420, %v383
      %v422 = vpop.permute.xlu0 %421
      %v424 = vmul.f32 %v422, %v116
      %v425 = vadd.f32 %v389, %v394
      %v426 = vadd.f32 %v399, %v404
      %v427 = vadd.f32 %v409, %v414
      %v428 = vadd.f32 %v419, %v424
      %v429 = vadd.f32 %v425, %v426
      %v430 = vadd.f32 %v427, %v428
      %v431 = vadd.f32 %v429, %v430
      %v432 = vadd.f32 %v431, %v76
      %v433 = vtanh.pop %v432
      %v435 = vsel %vm183, %v433, 0
      %437 = vmatprep.subr.mxu0 0.0
      %438 = vmatpush1.msra.mxu0 %v67
      %439 = vmatprep.subr.mxu0 0.0
      %440 = vmatpush1.msra.mxu0 %v68
      %441 = vmatprep.subr.mxu0 0.0
      %442 = vmatpush1.msra.mxu0 %v69
      %443 = vmatprep.subr.mxu0 0.0
      %444 = vmatpush1.msra.mxu0 %v70
      %445 = vmatprep.subr.mxu0 0.0
      %446 = vmatpush1.msra.mxu0 0.0
      %447 = vmatprep.subr.mxu0 0.0
      %448 = vmatpush1.msra.mxu0 0.0
      %449 = vmatprep.subr.mxu0 0.0
      %450 = vmatpush1.msra.mxu0 0.0
      %451 = vmatprep.subr.mxu0 0.0
      %452 = vmatpush1.msra.mxu0 0.0
      %453 = vmatprep.subr.mxu0 0.0
      %454 = vmatpush1.msra.mxu0 0.0
      %455 = vmatprep.subr.mxu0 0.0
      %456 = vmatpush1.msra.mxu0 0.0
      %457 = vmatprep.subr.mxu0 0.0
      %458 = vmatpush1.msra.mxu0 0.0
      %459 = vmatprep.subr.mxu0 0.0
      %460 = vmatpush1.msra.mxu0 0.0
      %461 = vmatprep.subr.mxu0 0.0
      %462 = vmatpush1.msra.mxu0 0.0
      %463 = vmatprep.subr.mxu0 0.0
      %464 = vmatpush1.msra.mxu0 0.0
      %465 = vmatprep.subr.mxu0 0.0
      %466 = vmatpush1.msra.mxu0 0.0
      %467 = vmatprep.subr.mxu0 0.0
      %468 = vmatpush1.msra.mxu0 0.0
      %469 = vmatprep.subr.mxu0 0.0
      %470 = vmatpush1.msra.mxu0 0.0
      %471 = vmatprep.subr.mxu0 0.0
      %472 = vmatpush1.msra.mxu0 0.0
      %473 = vmatprep.subr.mxu0 0.0
      %474 = vmatpush1.msra.mxu0 0.0
      %475 = vmatprep.subr.mxu0 0.0
      %476 = vmatpush1.msra.mxu0 0.0
      %477 = vmatprep.subr.mxu0 0.0
      %478 = vmatpush1.msra.mxu0 0.0
      %479 = vmatprep.subr.mxu0 0.0
      %480 = vmatpush1.msra.mxu0 0.0
      %481 = vmatprep.subr.mxu0 0.0
      %482 = vmatpush1.msra.mxu0 0.0
      %483 = vmatprep.subr.mxu0 0.0
      %484 = vmatpush1.msra.mxu0 0.0
      %485 = vmatprep.subr.mxu0 0.0
      %486 = vmatpush1.msra.mxu0 0.0
      %487 = vmatprep.subr.mxu0 0.0
      %488 = vmatpush1.msra.mxu0 0.0
      %489 = vmatprep.subr.mxu0 0.0
      %490 = vmatpush1.msra.mxu0 0.0
      %491 = vmatprep.subr.mxu0 0.0
      %492 = vmatpush1.msra.mxu0 0.0
      %493 = vmatprep.subr.mxu0 0.0
      %494 = vmatpush1.msra.mxu0 0.0
      %495 = vmatprep.subr.mxu0 0.0
      %496 = vmatpush1.msra.mxu0 0.0
      %497 = vmatprep.subr.mxu0 0.0
      %498 = vmatpush1.msra.mxu0 0.0
      %499 = vmatprep.subr.mxu0 0.0
      %500 = vmatpush1.msra.mxu0 0.0
      %501 = vmatprep.mubr.f32.mxu0 0.0
      %502 = vmatmul.mubr.f32.gmra.mrb[0].mxu0 %v435
      %v503 = vpop.f32.mrb[0].mxu0
      %v504 = vadd.f32 %v83, %v503
      %v505 = vpop.f32.mrb[0].mxu0
      %506 = vdwg.mxu0
      %v507 = vmul.f32 %v128, %v504
      %v508 = vadd.f32 %v126, %v507
      %510 = vset.pattern.permute.xlu0 0
      %511 = vperm.xlu0 %510, %v508
      %v512 = vpop.permute.xlu0 %511
      %v514 = vmul.f32 %v512, %v88
      %515 = vset.pattern.permute.xlu0 1
      %516 = vperm.xlu0 %515, %v508
      %v517 = vpop.permute.xlu0 %516
      %v519 = vmul.f32 %v517, %v92
      %520 = vset.pattern.permute.xlu0 2
      %521 = vperm.xlu0 %520, %v508
      %v522 = vpop.permute.xlu0 %521
      %v524 = vmul.f32 %v522, %v96
      %525 = vset.pattern.permute.xlu0 3
      %526 = vperm.xlu0 %525, %v508
      %v527 = vpop.permute.xlu0 %526
      %v529 = vmul.f32 %v527, %v100
      %530 = vset.pattern.permute.xlu0 4
      %531 = vperm.xlu0 %530, %v508
      %v532 = vpop.permute.xlu0 %531
      %v534 = vmul.f32 %v532, %v104
      %535 = vset.pattern.permute.xlu0 5
      %536 = vperm.xlu0 %535, %v508
      %v537 = vpop.permute.xlu0 %536
      %v539 = vmul.f32 %v537, %v108
      %540 = vset.pattern.permute.xlu0 6
      %541 = vperm.xlu0 %540, %v508
      %v542 = vpop.permute.xlu0 %541
      %v544 = vmul.f32 %v542, %v112
      %545 = vset.pattern.permute.xlu0 7
      %546 = vperm.xlu0 %545, %v508
      %v547 = vpop.permute.xlu0 %546
      %v549 = vmul.f32 %v547, %v116
      %v550 = vadd.f32 %v514, %v519
      %v551 = vadd.f32 %v524, %v529
      %v552 = vadd.f32 %v534, %v539
      %v553 = vadd.f32 %v544, %v549
      %v554 = vadd.f32 %v550, %v551
      %v555 = vadd.f32 %v552, %v553
      %v556 = vadd.f32 %v554, %v555
      %v557 = vadd.f32 %v556, %v76
      %v558 = vtanh.pop %v557
      %v560 = vsel %vm183, %v558, 0
      %562 = vmatprep.subr.mxu0 0.0
      %563 = vmatpush1.msra.mxu0 %v67
      %564 = vmatprep.subr.mxu0 0.0
      %565 = vmatpush1.msra.mxu0 %v68
      %566 = vmatprep.subr.mxu0 0.0
      %567 = vmatpush1.msra.mxu0 %v69
      %568 = vmatprep.subr.mxu0 0.0
      %569 = vmatpush1.msra.mxu0 %v70
      %570 = vmatprep.subr.mxu0 0.0
      %571 = vmatpush1.msra.mxu0 0.0
      %572 = vmatprep.subr.mxu0 0.0
      %573 = vmatpush1.msra.mxu0 0.0
      %574 = vmatprep.subr.mxu0 0.0
      %575 = vmatpush1.msra.mxu0 0.0
      %576 = vmatprep.subr.mxu0 0.0
      %577 = vmatpush1.msra.mxu0 0.0
      %578 = vmatprep.subr.mxu0 0.0
      %579 = vmatpush1.msra.mxu0 0.0
      %580 = vmatprep.subr.mxu0 0.0
      %581 = vmatpush1.msra.mxu0 0.0
      %582 = vmatprep.subr.mxu0 0.0
      %583 = vmatpush1.msra.mxu0 0.0
      %584 = vmatprep.subr.mxu0 0.0
      %585 = vmatpush1.msra.mxu0 0.0
      %586 = vmatprep.subr.mxu0 0.0
      %587 = vmatpush1.msra.mxu0 0.0
      %588 = vmatprep.subr.mxu0 0.0
      %589 = vmatpush1.msra.mxu0 0.0
      %590 = vmatprep.subr.mxu0 0.0
      %591 = vmatpush1.msra.mxu0 0.0
      %592 = vmatprep.subr.mxu0 0.0
      %593 = vmatpush1.msra.mxu0 0.0
      %594 = vmatprep.subr.mxu0 0.0
      %595 = vmatpush1.msra.mxu0 0.0
      %596 = vmatprep.subr.mxu0 0.0
      %597 = vmatpush1.msra.mxu0 0.0
      %598 = vmatprep.subr.mxu0 0.0
      %599 = vmatpush1.msra.mxu0 0.0
      %600 = vmatprep.subr.mxu0 0.0
      %601 = vmatpush1.msra.mxu0 0.0
      %602 = vmatprep.subr.mxu0 0.0
      %603 = vmatpush1.msra.mxu0 0.0
      %604 = vmatprep.subr.mxu0 0.0
      %605 = vmatpush1.msra.mxu0 0.0
      %606 = vmatprep.subr.mxu0 0.0
      %607 = vmatpush1.msra.mxu0 0.0
      %608 = vmatprep.subr.mxu0 0.0
      %609 = vmatpush1.msra.mxu0 0.0
      %610 = vmatprep.subr.mxu0 0.0
      %611 = vmatpush1.msra.mxu0 0.0
      %612 = vmatprep.subr.mxu0 0.0
      %613 = vmatpush1.msra.mxu0 0.0
      %614 = vmatprep.subr.mxu0 0.0
      %615 = vmatpush1.msra.mxu0 0.0
      %616 = vmatprep.subr.mxu0 0.0
      %617 = vmatpush1.msra.mxu0 0.0
      %618 = vmatprep.subr.mxu0 0.0
      %619 = vmatpush1.msra.mxu0 0.0
      %620 = vmatprep.subr.mxu0 0.0
      %621 = vmatpush1.msra.mxu0 0.0
      %622 = vmatprep.subr.mxu0 0.0
      %623 = vmatpush1.msra.mxu0 0.0
      %624 = vmatprep.subr.mxu0 0.0
      %625 = vmatpush1.msra.mxu0 0.0
      %626 = vmatprep.mubr.f32.mxu0 0.0
      %627 = vmatmul.mubr.f32.gmra.mrb[0].mxu0 %v560
      %v628 = vpop.f32.mrb[0].mxu0
      %v629 = vadd.f32 %v83, %v628
      %v630 = vpop.f32.mrb[0].mxu0
      %631 = vdwg.mxu0
      %v632 = vadd.f32 %v379, %v504
      %v633 = vmul.f32 %v632, 2.0
      %v634 = vadd.f32 %v254, %v633
      %v635 = vadd.f32 %v634, %v629
      %v636 = vmul.f32 %v132, %v635
      %v637 = vadd.f32 %v126, %v636
      %639 = vset.pattern.permute.xlu0 0
      %640 = vperm.xlu0 %639, %v637
      %v641 = vpop.permute.xlu0 %640
      %v643 = vmul.f32 %v641, %v88
      %644 = vset.pattern.permute.xlu0 1
      %645 = vperm.xlu0 %644, %v637
      %v646 = vpop.permute.xlu0 %645
      %v648 = vmul.f32 %v646, %v92
      %649 = vset.pattern.permute.xlu0 2
      %650 = vperm.xlu0 %649, %v637
      %v651 = vpop.permute.xlu0 %650
      %v653 = vmul.f32 %v651, %v96
      %654 = vset.pattern.permute.xlu0 3
      %655 = vperm.xlu0 %654, %v637
      %v656 = vpop.permute.xlu0 %655
      %v658 = vmul.f32 %v656, %v100
      %659 = vset.pattern.permute.xlu0 4
      %660 = vperm.xlu0 %659, %v637
      %v661 = vpop.permute.xlu0 %660
      %v663 = vmul.f32 %v661, %v104
      %664 = vset.pattern.permute.xlu0 5
      %665 = vperm.xlu0 %664, %v637
      %v666 = vpop.permute.xlu0 %665
      %v668 = vmul.f32 %v666, %v108
      %669 = vset.pattern.permute.xlu0 6
      %670 = vperm.xlu0 %669, %v637
      %v671 = vpop.permute.xlu0 %670
      %v673 = vmul.f32 %v671, %v112
      %674 = vset.pattern.permute.xlu0 7
      %675 = vperm.xlu0 %674, %v637
      %v676 = vpop.permute.xlu0 %675
      %v678 = vmul.f32 %v676, %v116
      %v679 = vadd.f32 %v643, %v648
      %v680 = vadd.f32 %v653, %v658
      %v681 = vadd.f32 %v663, %v668
      %v682 = vadd.f32 %v673, %v678
      %v683 = vadd.f32 %v679, %v680
      %v684 = vadd.f32 %v681, %v682
      %v685 = vadd.f32 %v683, %v684
      %v686 = vadd.f32 %v685, %v76
      %v687 = vtanh.pop %v686
      %v689 = vsel %vm183, %v687, 0
      %691 = vmatprep.subr.mxu0 0.0
      %692 = vmatpush1.msra.mxu0 %v67
      %693 = vmatprep.subr.mxu0 0.0
      %694 = vmatpush1.msra.mxu0 %v68
      %695 = vmatprep.subr.mxu0 0.0
      %696 = vmatpush1.msra.mxu0 %v69
      %697 = vmatprep.subr.mxu0 0.0
      %698 = vmatpush1.msra.mxu0 %v70
      %699 = vmatprep.subr.mxu0 0.0
      %700 = vmatpush1.msra.mxu0 0.0
      %701 = vmatprep.subr.mxu0 0.0
      %702 = vmatpush1.msra.mxu0 0.0
      %703 = vmatprep.subr.mxu0 0.0
      %704 = vmatpush1.msra.mxu0 0.0
      %705 = vmatprep.subr.mxu0 0.0
      %706 = vmatpush1.msra.mxu0 0.0
      %707 = vmatprep.subr.mxu0 0.0
      %708 = vmatpush1.msra.mxu0 0.0
      %709 = vmatprep.subr.mxu0 0.0
      %710 = vmatpush1.msra.mxu0 0.0
      %711 = vmatprep.subr.mxu0 0.0
      %712 = vmatpush1.msra.mxu0 0.0
      %713 = vmatprep.subr.mxu0 0.0
      %714 = vmatpush1.msra.mxu0 0.0
      %715 = vmatprep.subr.mxu0 0.0
      %716 = vmatpush1.msra.mxu0 0.0
      %717 = vmatprep.subr.mxu0 0.0
      %718 = vmatpush1.msra.mxu0 0.0
      %719 = vmatprep.subr.mxu0 0.0
      %720 = vmatpush1.msra.mxu0 0.0
      %721 = vmatprep.subr.mxu0 0.0
      %722 = vmatpush1.msra.mxu0 0.0
      %723 = vmatprep.subr.mxu0 0.0
      %724 = vmatpush1.msra.mxu0 0.0
      %725 = vmatprep.subr.mxu0 0.0
      %726 = vmatpush1.msra.mxu0 0.0
      %727 = vmatprep.subr.mxu0 0.0
      %728 = vmatpush1.msra.mxu0 0.0
      %729 = vmatprep.subr.mxu0 0.0
      %730 = vmatpush1.msra.mxu0 0.0
      %731 = vmatprep.subr.mxu0 0.0
      %732 = vmatpush1.msra.mxu0 0.0
      %733 = vmatprep.subr.mxu0 0.0
      %734 = vmatpush1.msra.mxu0 0.0
      %735 = vmatprep.subr.mxu0 0.0
      %736 = vmatpush1.msra.mxu0 0.0
      %737 = vmatprep.subr.mxu0 0.0
      %738 = vmatpush1.msra.mxu0 0.0
      %739 = vmatprep.subr.mxu0 0.0
      %740 = vmatpush1.msra.mxu0 0.0
      %741 = vmatprep.subr.mxu0 0.0
      %742 = vmatpush1.msra.mxu0 0.0
      %743 = vmatprep.subr.mxu0 0.0
      %744 = vmatpush1.msra.mxu0 0.0
      %745 = vmatprep.subr.mxu0 0.0
      %746 = vmatpush1.msra.mxu0 0.0
      %747 = vmatprep.subr.mxu0 0.0
      %748 = vmatpush1.msra.mxu0 0.0
      %749 = vmatprep.subr.mxu0 0.0
      %750 = vmatpush1.msra.mxu0 0.0
      %751 = vmatprep.subr.mxu0 0.0
      %752 = vmatpush1.msra.mxu0 0.0
      %753 = vmatprep.subr.mxu0 0.0
      %754 = vmatpush1.msra.mxu0 0.0
      %755 = vmatprep.mubr.f32.mxu0 0.0
      %756 = vmatmul.mubr.f32.gmra.mrb[0].mxu0 %v689
      %v757 = vpop.f32.mrb[0].mxu0
      %v758 = vadd.f32 %v83, %v757
      %v759 = vpop.f32.mrb[0].mxu0
      %760 = vdwg.mxu0
      %v761 = vmul.f32 %v130, %v758
      %v762 = vadd.f32 %v637, %v761
      %764 = vset.pattern.permute.xlu0 0
      %765 = vperm.xlu0 %764, %v762
      %v766 = vpop.permute.xlu0 %765
      %v768 = vmul.f32 %v766, %v88
      %769 = vset.pattern.permute.xlu0 1
      %770 = vperm.xlu0 %769, %v762
      %v771 = vpop.permute.xlu0 %770
      %v773 = vmul.f32 %v771, %v92
      %774 = vset.pattern.permute.xlu0 2
      %775 = vperm.xlu0 %774, %v762
      %v776 = vpop.permute.xlu0 %775
      %v778 = vmul.f32 %v776, %v96
      %779 = vset.pattern.permute.xlu0 3
      %780 = vperm.xlu0 %779, %v762
      %v781 = vpop.permute.xlu0 %780
      %v783 = vmul.f32 %v781, %v100
      %784 = vset.pattern.permute.xlu0 4
      %785 = vperm.xlu0 %784, %v762
      %v786 = vpop.permute.xlu0 %785
      %v788 = vmul.f32 %v786, %v104
      %789 = vset.pattern.permute.xlu0 5
      %790 = vperm.xlu0 %789, %v762
      %v791 = vpop.permute.xlu0 %790
      %v793 = vmul.f32 %v791, %v108
      %794 = vset.pattern.permute.xlu0 6
      %795 = vperm.xlu0 %794, %v762
      %v796 = vpop.permute.xlu0 %795
      %v798 = vmul.f32 %v796, %v112
      %799 = vset.pattern.permute.xlu0 7
      %800 = vperm.xlu0 %799, %v762
      %v801 = vpop.permute.xlu0 %800
      %v803 = vmul.f32 %v801, %v116
      %v804 = vadd.f32 %v768, %v773
      %v805 = vadd.f32 %v778, %v783
      %v806 = vadd.f32 %v788, %v793
      %v807 = vadd.f32 %v798, %v803
      %v808 = vadd.f32 %v804, %v805
      %v809 = vadd.f32 %v806, %v807
      %v810 = vadd.f32 %v808, %v809
      %v811 = vadd.f32 %v810, %v76
      %v812 = vtanh.pop %v811
      %v814 = vsel %vm183, %v812, 0
      %816 = vmatprep.subr.mxu0 0.0
      %817 = vmatpush1.msra.mxu0 %v67
      %818 = vmatprep.subr.mxu0 0.0
      %819 = vmatpush1.msra.mxu0 %v68
      %820 = vmatprep.subr.mxu0 0.0
      %821 = vmatpush1.msra.mxu0 %v69
      %822 = vmatprep.subr.mxu0 0.0
      %823 = vmatpush1.msra.mxu0 %v70
      %824 = vmatprep.subr.mxu0 0.0
      %825 = vmatpush1.msra.mxu0 0.0
      %826 = vmatprep.subr.mxu0 0.0
      %827 = vmatpush1.msra.mxu0 0.0
      %828 = vmatprep.subr.mxu0 0.0
      %829 = vmatpush1.msra.mxu0 0.0
      %830 = vmatprep.subr.mxu0 0.0
      %831 = vmatpush1.msra.mxu0 0.0
      %832 = vmatprep.subr.mxu0 0.0
      %833 = vmatpush1.msra.mxu0 0.0
      %834 = vmatprep.subr.mxu0 0.0
      %835 = vmatpush1.msra.mxu0 0.0
      %836 = vmatprep.subr.mxu0 0.0
      %837 = vmatpush1.msra.mxu0 0.0
      %838 = vmatprep.subr.mxu0 0.0
      %839 = vmatpush1.msra.mxu0 0.0
      %840 = vmatprep.subr.mxu0 0.0
      %841 = vmatpush1.msra.mxu0 0.0
      %842 = vmatprep.subr.mxu0 0.0
      %843 = vmatpush1.msra.mxu0 0.0
      %844 = vmatprep.subr.mxu0 0.0
      %845 = vmatpush1.msra.mxu0 0.0
      %846 = vmatprep.subr.mxu0 0.0
      %847 = vmatpush1.msra.mxu0 0.0
      %848 = vmatprep.subr.mxu0 0.0
      %849 = vmatpush1.msra.mxu0 0.0
      %850 = vmatprep.subr.mxu0 0.0
      %851 = vmatpush1.msra.mxu0 0.0
      %852 = vmatprep.subr.mxu0 0.0
      %853 = vmatpush1.msra.mxu0 0.0
      %854 = vmatprep.subr.mxu0 0.0
      %855 = vmatpush1.msra.mxu0 0.0
      %856 = vmatprep.subr.mxu0 0.0
      %857 = vmatpush1.msra.mxu0 0.0
      %858 = vmatprep.subr.mxu0 0.0
      %859 = vmatpush1.msra.mxu0 0.0
      %860 = vmatprep.subr.mxu0 0.0
      %861 = vmatpush1.msra.mxu0 0.0
      %862 = vmatprep.subr.mxu0 0.0
      %863 = vmatpush1.msra.mxu0 0.0
      %864 = vmatprep.subr.mxu0 0.0
      %865 = vmatpush1.msra.mxu0 0.0
      %866 = vmatprep.subr.mxu0 0.0
      %867 = vmatpush1.msra.mxu0 0.0
      %868 = vmatprep.subr.mxu0 0.0
      %869 = vmatpush1.msra.mxu0 0.0
      %870 = vmatprep.subr.mxu0 0.0
      %871 = vmatpush1.msra.mxu0 0.0
      %872 = vmatprep.subr.mxu0 0.0
      %873 = vmatpush1.msra.mxu0 0.0
      %874 = vmatprep.subr.mxu0 0.0
      %875 = vmatpush1.msra.mxu0 0.0
      %876 = vmatprep.subr.mxu0 0.0
      %877 = vmatpush1.msra.mxu0 0.0
      %878 = vmatprep.subr.mxu0 0.0
      %879 = vmatpush1.msra.mxu0 0.0
      %880 = vmatprep.mubr.f32.mxu0 0.0
      %881 = vmatmul.mubr.f32.gmra.mrb[0].mxu0 %v814
      %v882 = vpop.f32.mrb[0].mxu0
      %v883 = vadd.f32 %v83, %v882
      %v884 = vpop.f32.mrb[0].mxu0
      %885 = vdwg.mxu0
      %v886 = vmul.f32 %v130, %v883
      %v887 = vadd.f32 %v637, %v886
      %889 = vset.pattern.permute.xlu0 0
      %890 = vperm.xlu0 %889, %v887
      %v891 = vpop.permute.xlu0 %890
      %v893 = vmul.f32 %v891, %v88
      %894 = vset.pattern.permute.xlu0 1
      %895 = vperm.xlu0 %894, %v887
      %v896 = vpop.permute.xlu0 %895
      %v898 = vmul.f32 %v896, %v92
      %899 = vset.pattern.permute.xlu0 2
      %900 = vperm.xlu0 %899, %v887
      %v901 = vpop.permute.xlu0 %900
      %v903 = vmul.f32 %v901, %v96
      %904 = vset.pattern.permute.xlu0 3
      %905 = vperm.xlu0 %904, %v887
      %v906 = vpop.permute.xlu0 %905
      %v908 = vmul.f32 %v906, %v100
      %909 = vset.pattern.permute.xlu0 4
      %910 = vperm.xlu0 %909, %v887
      %v911 = vpop.permute.xlu0 %910
      %v913 = vmul.f32 %v911, %v104
      %914 = vset.pattern.permute.xlu0 5
      %915 = vperm.xlu0 %914, %v887
      %v916 = vpop.permute.xlu0 %915
      %v918 = vmul.f32 %v916, %v108
      %919 = vset.pattern.permute.xlu0 6
      %920 = vperm.xlu0 %919, %v887
      %v921 = vpop.permute.xlu0 %920
      %v923 = vmul.f32 %v921, %v112
      %924 = vset.pattern.permute.xlu0 7
      %925 = vperm.xlu0 %924, %v887
      %v926 = vpop.permute.xlu0 %925
      %v928 = vmul.f32 %v926, %v116
      %v929 = vadd.f32 %v893, %v898
      %v930 = vadd.f32 %v903, %v908
      %v931 = vadd.f32 %v913, %v918
      %v932 = vadd.f32 %v923, %v928
      %v933 = vadd.f32 %v929, %v930
      %v934 = vadd.f32 %v931, %v932
      %v935 = vadd.f32 %v933, %v934
      %v936 = vadd.f32 %v935, %v76
      %v937 = vtanh.pop %v936
      %v939 = vsel %vm183, %v937, 0
      %941 = vmatprep.subr.mxu0 0.0
      %942 = vmatpush1.msra.mxu0 %v67
      %943 = vmatprep.subr.mxu0 0.0
      %944 = vmatpush1.msra.mxu0 %v68
      %945 = vmatprep.subr.mxu0 0.0
      %946 = vmatpush1.msra.mxu0 %v69
      %947 = vmatprep.subr.mxu0 0.0
      %948 = vmatpush1.msra.mxu0 %v70
      %949 = vmatprep.subr.mxu0 0.0
      %950 = vmatpush1.msra.mxu0 0.0
      %951 = vmatprep.subr.mxu0 0.0
      %952 = vmatpush1.msra.mxu0 0.0
      %953 = vmatprep.subr.mxu0 0.0
      %954 = vmatpush1.msra.mxu0 0.0
      %955 = vmatprep.subr.mxu0 0.0
      %956 = vmatpush1.msra.mxu0 0.0
      %957 = vmatprep.subr.mxu0 0.0
      %958 = vmatpush1.msra.mxu0 0.0
      %959 = vmatprep.subr.mxu0 0.0
      %960 = vmatpush1.msra.mxu0 0.0
      %961 = vmatprep.subr.mxu0 0.0
      %962 = vmatpush1.msra.mxu0 0.0
      %963 = vmatprep.subr.mxu0 0.0
      %964 = vmatpush1.msra.mxu0 0.0
      %965 = vmatprep.subr.mxu0 0.0
      %966 = vmatpush1.msra.mxu0 0.0
      %967 = vmatprep.subr.mxu0 0.0
      %968 = vmatpush1.msra.mxu0 0.0
      %969 = vmatprep.subr.mxu0 0.0
      %970 = vmatpush1.msra.mxu0 0.0
      %971 = vmatprep.subr.mxu0 0.0
      %972 = vmatpush1.msra.mxu0 0.0
      %973 = vmatprep.subr.mxu0 0.0
      %974 = vmatpush1.msra.mxu0 0.0
      %975 = vmatprep.subr.mxu0 0.0
      %976 = vmatpush1.msra.mxu0 0.0
      %977 = vmatprep.subr.mxu0 0.0
      %978 = vmatpush1.msra.mxu0 0.0
      %979 = vmatprep.subr.mxu0 0.0
      %980 = vmatpush1.msra.mxu0 0.0
      %981 = vmatprep.subr.mxu0 0.0
      %982 = vmatpush1.msra.mxu0 0.0
      %983 = vmatprep.subr.mxu0 0.0
      %984 = vmatpush1.msra.mxu0 0.0
      %985 = vmatprep.subr.mxu0 0.0
      %986 = vmatpush1.msra.mxu0 0.0
      %987 = vmatprep.subr.mxu0 0.0
      %988 = vmatpush1.msra.mxu0 0.0
      %989 = vmatprep.subr.mxu0 0.0
      %990 = vmatpush1.msra.mxu0 0.0
      %991 = vmatprep.subr.mxu0 0.0
      %992 = vmatpush1.msra.mxu0 0.0
      %993 = vmatprep.subr.mxu0 0.0
      %994 = vmatpush1.msra.mxu0 0.0
      %995 = vmatprep.subr.mxu0 0.0
      %996 = vmatpush1.msra.mxu0 0.0
      %997 = vmatprep.subr.mxu0 0.0
      %998 = vmatpush1.msra.mxu0 0.0
      %999 = vmatprep.subr.mxu0 0.0
      %1000 = vmatpush1.msra.mxu0 0.0
      %1001 = vmatprep.subr.mxu0 0.0
      %1002 = vmatpush1.msra.mxu0 0.0
      %1003 = vmatprep.subr.mxu0 0.0
      %1004 = vmatpush1.msra.mxu0 0.0
      %1005 = vmatprep.mubr.f32.mxu0 0.0
      %1006 = vmatmul.mubr.f32.gmra.mrb[0].mxu0 %v939
      %v1007 = vpop.f32.mrb[0].mxu0
      %v1008 = vadd.f32 %v83, %v1007
      %v1009 = vpop.f32.mrb[0].mxu0
      %1010 = vdwg.mxu0
      %v1011 = vmul.f32 %v128, %v1008
      %v1012 = vadd.f32 %v637, %v1011
      %1014 = vset.pattern.permute.xlu0 0
      %1015 = vperm.xlu0 %1014, %v1012
      %v1016 = vpop.permute.xlu0 %1015
      %v1018 = vmul.f32 %v1016, %v88
      %1019 = vset.pattern.permute.xlu0 1
      %1020 = vperm.xlu0 %1019, %v1012
      %v1021 = vpop.permute.xlu0 %1020
      %v1023 = vmul.f32 %v1021, %v92
      %1024 = vset.pattern.permute.xlu0 2
      %1025 = vperm.xlu0 %1024, %v1012
      %v1026 = vpop.permute.xlu0 %1025
      %v1028 = vmul.f32 %v1026, %v96
      %1029 = vset.pattern.permute.xlu0 3
      %1030 = vperm.xlu0 %1029, %v1012
      %v1031 = vpop.permute.xlu0 %1030
      %v1033 = vmul.f32 %v1031, %v100
      %1034 = vset.pattern.permute.xlu0 4
      %1035 = vperm.xlu0 %1034, %v1012
      %v1036 = vpop.permute.xlu0 %1035
      %v1038 = vmul.f32 %v1036, %v104
      %1039 = vset.pattern.permute.xlu0 5
      %1040 = vperm.xlu0 %1039, %v1012
      %v1041 = vpop.permute.xlu0 %1040
      %v1043 = vmul.f32 %v1041, %v108
      %1044 = vset.pattern.permute.xlu0 6
      %1045 = vperm.xlu0 %1044, %v1012
      %v1046 = vpop.permute.xlu0 %1045
      %v1048 = vmul.f32 %v1046, %v112
      %1049 = vset.pattern.permute.xlu0 7
      %1050 = vperm.xlu0 %1049, %v1012
      %v1051 = vpop.permute.xlu0 %1050
      %v1053 = vmul.f32 %v1051, %v116
      %v1054 = vadd.f32 %v1018, %v1023
      %v1055 = vadd.f32 %v1028, %v1033
      %v1056 = vadd.f32 %v1038, %v1043
      %v1057 = vadd.f32 %v1048, %v1053
      %v1058 = vadd.f32 %v1054, %v1055
      %v1059 = vadd.f32 %v1056, %v1057
      %v1060 = vadd.f32 %v1058, %v1059
      %v1061 = vadd.f32 %v1060, %v76
      %v1062 = vtanh.pop %v1061
      %v1064 = vsel %vm183, %v1062, 0
      %1066 = vmatprep.subr.mxu0 0.0
      %1067 = vmatpush1.msra.mxu0 %v67
      %1068 = vmatprep.subr.mxu0 0.0
      %1069 = vmatpush1.msra.mxu0 %v68
      %1070 = vmatprep.subr.mxu0 0.0
      %1071 = vmatpush1.msra.mxu0 %v69
      %1072 = vmatprep.subr.mxu0 0.0
      %1073 = vmatpush1.msra.mxu0 %v70
      %1074 = vmatprep.subr.mxu0 0.0
      %1075 = vmatpush1.msra.mxu0 0.0
      %1076 = vmatprep.subr.mxu0 0.0
      %1077 = vmatpush1.msra.mxu0 0.0
      %1078 = vmatprep.subr.mxu0 0.0
      %1079 = vmatpush1.msra.mxu0 0.0
      %1080 = vmatprep.subr.mxu0 0.0
      %1081 = vmatpush1.msra.mxu0 0.0
      %1082 = vmatprep.subr.mxu0 0.0
      %1083 = vmatpush1.msra.mxu0 0.0
      %1084 = vmatprep.subr.mxu0 0.0
      %1085 = vmatpush1.msra.mxu0 0.0
      %1086 = vmatprep.subr.mxu0 0.0
      %1087 = vmatpush1.msra.mxu0 0.0
      %1088 = vmatprep.subr.mxu0 0.0
      %1089 = vmatpush1.msra.mxu0 0.0
      %1090 = vmatprep.subr.mxu0 0.0
      %1091 = vmatpush1.msra.mxu0 0.0
      %1092 = vmatprep.subr.mxu0 0.0
      %1093 = vmatpush1.msra.mxu0 0.0
      %1094 = vmatprep.subr.mxu0 0.0
      %1095 = vmatpush1.msra.mxu0 0.0
      %1096 = vmatprep.subr.mxu0 0.0
      %1097 = vmatpush1.msra.mxu0 0.0
      %1098 = vmatprep.subr.mxu0 0.0
      %1099 = vmatpush1.msra.mxu0 0.0
      %1100 = vmatprep.subr.mxu0 0.0
      %1101 = vmatpush1.msra.mxu0 0.0
      %1102 = vmatprep.subr.mxu0 0.0
      %1103 = vmatpush1.msra.mxu0 0.0
      %1104 = vmatprep.subr.mxu0 0.0
      %1105 = vmatpush1.msra.mxu0 0.0
      %1106 = vmatprep.subr.mxu0 0.0
      %1107 = vmatpush1.msra.mxu0 0.0
      %1108 = vmatprep.subr.mxu0 0.0
      %1109 = vmatpush1.msra.mxu0 0.0
      %1110 = vmatprep.subr.mxu0 0.0
      %1111 = vmatpush1.msra.mxu0 0.0
      %1112 = vmatprep.subr.mxu0 0.0
      %1113 = vmatpush1.msra.mxu0 0.0
      %1114 = vmatprep.subr.mxu0 0.0
      %1115 = vmatpush1.msra.mxu0 0.0
      %1116 = vmatprep.subr.mxu0 0.0
      %1117 = vmatpush1.msra.mxu0 0.0
      %1118 = vmatprep.subr.mxu0 0.0
      %1119 = vmatpush1.msra.mxu0 0.0
      %1120 = vmatprep.subr.mxu0 0.0
      %1121 = vmatpush1.msra.mxu0 0.0
      %1122 = vmatprep.subr.mxu0 0.0
      %1123 = vmatpush1.msra.mxu0 0.0
      %1124 = vmatprep.subr.mxu0 0.0
      %1125 = vmatpush1.msra.mxu0 0.0
      %1126 = vmatprep.subr.mxu0 0.0
      %1127 = vmatpush1.msra.mxu0 0.0
      %1128 = vmatprep.subr.mxu0 0.0
      %1129 = vmatpush1.msra.mxu0 0.0
      %1130 = vmatprep.mubr.f32.mxu0 0.0
      %1131 = vmatmul.mubr.f32.gmra.mrb[0].mxu0 %v1064
      %v1132 = vpop.f32.mrb[0].mxu0
      %v1133 = vadd.f32 %v83, %v1132
      %v1134 = vpop.f32.mrb[0].mxu0
      %1135 = vdwg.mxu0
      %v1136 = vadd.f32 %v883, %v1008
      %v1137 = vmul.f32 %v1136, 2.0
      %v1138 = vadd.f32 %v758, %v1137
      %v1139 = vadd.f32 %v1138, %v1133
      %v1140 = vmul.f32 %v132, %v1139
      %v1141 = vadd.f32 %v637, %v1140
      %1143 = vset.pattern.permute.xlu0 0
      %1144 = vperm.xlu0 %1143, %v1141
      %v1145 = vpop.permute.xlu0 %1144
      %v1147 = vmul.f32 %v1145, %v88
      %1148 = vset.pattern.permute.xlu0 1
      %1149 = vperm.xlu0 %1148, %v1141
      %v1150 = vpop.permute.xlu0 %1149
      %v1152 = vmul.f32 %v1150, %v92
      %1153 = vset.pattern.permute.xlu0 2
      %1154 = vperm.xlu0 %1153, %v1141
      %v1155 = vpop.permute.xlu0 %1154
      %v1157 = vmul.f32 %v1155, %v96
      %1158 = vset.pattern.permute.xlu0 3
      %1159 = vperm.xlu0 %1158, %v1141
      %v1160 = vpop.permute.xlu0 %1159
      %v1162 = vmul.f32 %v1160, %v100
      %1163 = vset.pattern.permute.xlu0 4
      %1164 = vperm.xlu0 %1163, %v1141
      %v1165 = vpop.permute.xlu0 %1164
      %v1167 = vmul.f32 %v1165, %v104
      %1168 = vset.pattern.permute.xlu0 5
      %1169 = vperm.xlu0 %1168, %v1141
      %v1170 = vpop.permute.xlu0 %1169
      %v1172 = vmul.f32 %v1170, %v108
      %1173 = vset.pattern.permute.xlu0 6
      %1174 = vperm.xlu0 %1173, %v1141
      %v1175 = vpop.permute.xlu0 %1174
      %v1177 = vmul.f32 %v1175, %v112
      %1178 = vset.pattern.permute.xlu0 7
      %1179 = vperm.xlu0 %1178, %v1141
      %v1180 = vpop.permute.xlu0 %1179
      %v1182 = vmul.f32 %v1180, %v116
      %v1183 = vadd.f32 %v1147, %v1152
      %v1184 = vadd.f32 %v1157, %v1162
      %v1185 = vadd.f32 %v1167, %v1172
      %v1186 = vadd.f32 %v1177, %v1182
      %v1187 = vadd.f32 %v1183, %v1184
      %v1188 = vadd.f32 %v1185, %v1186
      %v1189 = vadd.f32 %v1187, %v1188
      %v1190 = vadd.f32 %v1189, %v76
      %v1191 = vtanh.pop %v1190
      %v1193 = vsel %vm183, %v1191, 0
      %1195 = vmatprep.subr.mxu0 0.0
      %1196 = vmatpush1.msra.mxu0 %v67
      %1197 = vmatprep.subr.mxu0 0.0
      %1198 = vmatpush1.msra.mxu0 %v68
      %1199 = vmatprep.subr.mxu0 0.0
      %1200 = vmatpush1.msra.mxu0 %v69
      %1201 = vmatprep.subr.mxu0 0.0
      %1202 = vmatpush1.msra.mxu0 %v70
      %1203 = vmatprep.subr.mxu0 0.0
      %1204 = vmatpush1.msra.mxu0 0.0
      %1205 = vmatprep.subr.mxu0 0.0
      %1206 = vmatpush1.msra.mxu0 0.0
      %1207 = vmatprep.subr.mxu0 0.0
      %1208 = vmatpush1.msra.mxu0 0.0
      %1209 = vmatprep.subr.mxu0 0.0
      %1210 = vmatpush1.msra.mxu0 0.0
      %1211 = vmatprep.subr.mxu0 0.0
      %1212 = vmatpush1.msra.mxu0 0.0
      %1213 = vmatprep.subr.mxu0 0.0
      %1214 = vmatpush1.msra.mxu0 0.0
      %1215 = vmatprep.subr.mxu0 0.0
      %1216 = vmatpush1.msra.mxu0 0.0
      %1217 = vmatprep.subr.mxu0 0.0
      %1218 = vmatpush1.msra.mxu0 0.0
      %1219 = vmatprep.subr.mxu0 0.0
      %1220 = vmatpush1.msra.mxu0 0.0
      %1221 = vmatprep.subr.mxu0 0.0
      %1222 = vmatpush1.msra.mxu0 0.0
      %1223 = vmatprep.subr.mxu0 0.0
      %1224 = vmatpush1.msra.mxu0 0.0
      %1225 = vmatprep.subr.mxu0 0.0
      %1226 = vmatpush1.msra.mxu0 0.0
      %1227 = vmatprep.subr.mxu0 0.0
      %1228 = vmatpush1.msra.mxu0 0.0
      %1229 = vmatprep.subr.mxu0 0.0
      %1230 = vmatpush1.msra.mxu0 0.0
      %1231 = vmatprep.subr.mxu0 0.0
      %1232 = vmatpush1.msra.mxu0 0.0
      %1233 = vmatprep.subr.mxu0 0.0
      %1234 = vmatpush1.msra.mxu0 0.0
      %1235 = vmatprep.subr.mxu0 0.0
      %1236 = vmatpush1.msra.mxu0 0.0
      %1237 = vmatprep.subr.mxu0 0.0
      %1238 = vmatpush1.msra.mxu0 0.0
      %1239 = vmatprep.subr.mxu0 0.0
      %1240 = vmatpush1.msra.mxu0 0.0
      %1241 = vmatprep.subr.mxu0 0.0
      %1242 = vmatpush1.msra.mxu0 0.0
      %1243 = vmatprep.subr.mxu0 0.0
      %1244 = vmatpush1.msra.mxu0 0.0
      %1245 = vmatprep.subr.mxu0 0.0
      %1246 = vmatpush1.msra.mxu0 0.0
      %1247 = vmatprep.subr.mxu0 0.0
      %1248 = vmatpush1.msra.mxu0 0.0
      %1249 = vmatprep.subr.mxu0 0.0
      %1250 = vmatpush1.msra.mxu0 0.0
      %1251 = vmatprep.subr.mxu0 0.0
      %1252 = vmatpush1.msra.mxu0 0.0
      %1253 = vmatprep.subr.mxu0 0.0
      %1254 = vmatpush1.msra.mxu0 0.0
      %1255 = vmatprep.subr.mxu0 0.0
      %1256 = vmatpush1.msra.mxu0 0.0
      %1257 = vmatprep.subr.mxu0 0.0
      %1258 = vmatpush1.msra.mxu0 0.0
      %1259 = vmatprep.mubr.f32.mxu0 0.0
      %1260 = vmatmul.mubr.f32.gmra.mrb[0].mxu0 %v1193
      %v1261 = vpop.f32.mrb[0].mxu0
      %v1262 = vadd.f32 %v83, %v1261
      %v1263 = vpop.f32.mrb[0].mxu0
      %1264 = vdwg.mxu0
      %v1265 = vmul.f32 %v130, %v1262
      %v1266 = vadd.f32 %v1141, %v1265
      %1268 = vset.pattern.permute.xlu0 0
      %1269 = vperm.xlu0 %1268, %v1266
      %v1270 = vpop.permute.xlu0 %1269
      %v1272 = vmul.f32 %v1270, %v88
      %1273 = vset.pattern.permute.xlu0 1
      %1274 = vperm.xlu0 %1273, %v1266
      %v1275 = vpop.permute.xlu0 %1274
      %v1277 = vmul.f32 %v1275, %v92
      %1278 = vset.pattern.permute.xlu0 2
      %1279 = vperm.xlu0 %1278, %v1266
      %v1280 = vpop.permute.xlu0 %1279
      %v1282 = vmul.f32 %v1280, %v96
      %1283 = vset.pattern.permute.xlu0 3
      %1284 = vperm.xlu0 %1283, %v1266
      %v1285 = vpop.permute.xlu0 %1284
      %v1287 = vmul.f32 %v1285, %v100
      %1288 = vset.pattern.permute.xlu0 4
      %1289 = vperm.xlu0 %1288, %v1266
      %v1290 = vpop.permute.xlu0 %1289
      %v1292 = vmul.f32 %v1290, %v104
      %1293 = vset.pattern.permute.xlu0 5
      %1294 = vperm.xlu0 %1293, %v1266
      %v1295 = vpop.permute.xlu0 %1294
      %v1297 = vmul.f32 %v1295, %v108
      %1298 = vset.pattern.permute.xlu0 6
      %1299 = vperm.xlu0 %1298, %v1266
      %v1300 = vpop.permute.xlu0 %1299
      %v1302 = vmul.f32 %v1300, %v112
      %1303 = vset.pattern.permute.xlu0 7
      %1304 = vperm.xlu0 %1303, %v1266
      %v1305 = vpop.permute.xlu0 %1304
      %v1307 = vmul.f32 %v1305, %v116
      %v1308 = vadd.f32 %v1272, %v1277
      %v1309 = vadd.f32 %v1282, %v1287
      %v1310 = vadd.f32 %v1292, %v1297
      %v1311 = vadd.f32 %v1302, %v1307
      %v1312 = vadd.f32 %v1308, %v1309
      %v1313 = vadd.f32 %v1310, %v1311
      %v1314 = vadd.f32 %v1312, %v1313
      %v1315 = vadd.f32 %v1314, %v76
      %v1316 = vtanh.pop %v1315
      %v1318 = vsel %vm183, %v1316, 0
      %1320 = vmatprep.subr.mxu0 0.0
      %1321 = vmatpush1.msra.mxu0 %v67
      %1322 = vmatprep.subr.mxu0 0.0
      %1323 = vmatpush1.msra.mxu0 %v68
      %1324 = vmatprep.subr.mxu0 0.0
      %1325 = vmatpush1.msra.mxu0 %v69
      %1326 = vmatprep.subr.mxu0 0.0
      %1327 = vmatpush1.msra.mxu0 %v70
      %1328 = vmatprep.subr.mxu0 0.0
      %1329 = vmatpush1.msra.mxu0 0.0
      %1330 = vmatprep.subr.mxu0 0.0
      %1331 = vmatpush1.msra.mxu0 0.0
      %1332 = vmatprep.subr.mxu0 0.0
      %1333 = vmatpush1.msra.mxu0 0.0
      %1334 = vmatprep.subr.mxu0 0.0
      %1335 = vmatpush1.msra.mxu0 0.0
      %1336 = vmatprep.subr.mxu0 0.0
      %1337 = vmatpush1.msra.mxu0 0.0
      %1338 = vmatprep.subr.mxu0 0.0
      %1339 = vmatpush1.msra.mxu0 0.0
      %1340 = vmatprep.subr.mxu0 0.0
      %1341 = vmatpush1.msra.mxu0 0.0
      %1342 = vmatprep.subr.mxu0 0.0
      %1343 = vmatpush1.msra.mxu0 0.0
      %1344 = vmatprep.subr.mxu0 0.0
      %1345 = vmatpush1.msra.mxu0 0.0
      %1346 = vmatprep.subr.mxu0 0.0
      %1347 = vmatpush1.msra.mxu0 0.0
      %1348 = vmatprep.subr.mxu0 0.0
      %1349 = vmatpush1.msra.mxu0 0.0
      %1350 = vmatprep.subr.mxu0 0.0
      %1351 = vmatpush1.msra.mxu0 0.0
      %1352 = vmatprep.subr.mxu0 0.0
      %1353 = vmatpush1.msra.mxu0 0.0
      %1354 = vmatprep.subr.mxu0 0.0
      %1355 = vmatpush1.msra.mxu0 0.0
      %1356 = vmatprep.subr.mxu0 0.0
      %1357 = vmatpush1.msra.mxu0 0.0
      %1358 = vmatprep.subr.mxu0 0.0
      %1359 = vmatpush1.msra.mxu0 0.0
      %1360 = vmatprep.subr.mxu0 0.0
      %1361 = vmatpush1.msra.mxu0 0.0
      %1362 = vmatprep.subr.mxu0 0.0
      %1363 = vmatpush1.msra.mxu0 0.0
      %1364 = vmatprep.subr.mxu0 0.0
      %1365 = vmatpush1.msra.mxu0 0.0
      %1366 = vmatprep.subr.mxu0 0.0
      %1367 = vmatpush1.msra.mxu0 0.0
      %1368 = vmatprep.subr.mxu0 0.0
      %1369 = vmatpush1.msra.mxu0 0.0
      %1370 = vmatprep.subr.mxu0 0.0
      %1371 = vmatpush1.msra.mxu0 0.0
      %1372 = vmatprep.subr.mxu0 0.0
      %1373 = vmatpush1.msra.mxu0 0.0
      %1374 = vmatprep.subr.mxu0 0.0
      %1375 = vmatpush1.msra.mxu0 0.0
      %1376 = vmatprep.subr.mxu0 0.0
      %1377 = vmatpush1.msra.mxu0 0.0
      %1378 = vmatprep.subr.mxu0 0.0
      %1379 = vmatpush1.msra.mxu0 0.0
      %1380 = vmatprep.subr.mxu0 0.0
      %1381 = vmatpush1.msra.mxu0 0.0
      %1382 = vmatprep.subr.mxu0 0.0
      %1383 = vmatpush1.msra.mxu0 0.0
      %1384 = vmatprep.mubr.f32.mxu0 0.0
      %1385 = vmatmul.mubr.f32.gmra.mrb[0].mxu0 %v1318
      %v1386 = vpop.f32.mrb[0].mxu0
      %v1387 = vadd.f32 %v83, %v1386
      %v1388 = vpop.f32.mrb[0].mxu0
      %1389 = vdwg.mxu0
      %v1390 = vmul.f32 %v130, %v1387
      %v1391 = vadd.f32 %v1141, %v1390
      %1393 = vset.pattern.permute.xlu0 0
      %1394 = vperm.xlu0 %1393, %v1391
      %v1395 = vpop.permute.xlu0 %1394
      %v1397 = vmul.f32 %v1395, %v88
      %1398 = vset.pattern.permute.xlu0 1
      %1399 = vperm.xlu0 %1398, %v1391
      %v1400 = vpop.permute.xlu0 %1399
      %v1402 = vmul.f32 %v1400, %v92
      %1403 = vset.pattern.permute.xlu0 2
      %1404 = vperm.xlu0 %1403, %v1391
      %v1405 = vpop.permute.xlu0 %1404
      %v1407 = vmul.f32 %v1405, %v96
      %1408 = vset.pattern.permute.xlu0 3
      %1409 = vperm.xlu0 %1408, %v1391
      %v1410 = vpop.permute.xlu0 %1409
      %v1412 = vmul.f32 %v1410, %v100
      %1413 = vset.pattern.permute.xlu0 4
      %1414 = vperm.xlu0 %1413, %v1391
      %v1415 = vpop.permute.xlu0 %1414
      %v1417 = vmul.f32 %v1415, %v104
      %1418 = vset.pattern.permute.xlu0 5
      %1419 = vperm.xlu0 %1418, %v1391
      %v1420 = vpop.permute.xlu0 %1419
      %v1422 = vmul.f32 %v1420, %v108
      %1423 = vset.pattern.permute.xlu0 6
      %1424 = vperm.xlu0 %1423, %v1391
      %v1425 = vpop.permute.xlu0 %1424
      %v1427 = vmul.f32 %v1425, %v112
      %1428 = vset.pattern.permute.xlu0 7
      %1429 = vperm.xlu0 %1428, %v1391
      %v1430 = vpop.permute.xlu0 %1429
      %v1432 = vmul.f32 %v1430, %v116
      %v1433 = vadd.f32 %v1397, %v1402
      %v1434 = vadd.f32 %v1407, %v1412
      %v1435 = vadd.f32 %v1417, %v1422
      %v1436 = vadd.f32 %v1427, %v1432
      %v1437 = vadd.f32 %v1433, %v1434
      %v1438 = vadd.f32 %v1435, %v1436
      %v1439 = vadd.f32 %v1437, %v1438
      %v1440 = vadd.f32 %v1439, %v76
      %v1441 = vtanh.pop %v1440
      %v1443 = vsel %vm183, %v1441, 0
      %1445 = vmatprep.subr.mxu0 0.0
      %1446 = vmatpush1.msra.mxu0 %v67
      %1447 = vmatprep.subr.mxu0 0.0
      %1448 = vmatpush1.msra.mxu0 %v68
      %1449 = vmatprep.subr.mxu0 0.0
      %1450 = vmatpush1.msra.mxu0 %v69
      %1451 = vmatprep.subr.mxu0 0.0
      %1452 = vmatpush1.msra.mxu0 %v70
      %1453 = vmatprep.subr.mxu0 0.0
      %1454 = vmatpush1.msra.mxu0 0.0
      %1455 = vmatprep.subr.mxu0 0.0
      %1456 = vmatpush1.msra.mxu0 0.0
      %1457 = vmatprep.subr.mxu0 0.0
      %1458 = vmatpush1.msra.mxu0 0.0
      %1459 = vmatprep.subr.mxu0 0.0
      %1460 = vmatpush1.msra.mxu0 0.0
      %1461 = vmatprep.subr.mxu0 0.0
      %1462 = vmatpush1.msra.mxu0 0.0
      %1463 = vmatprep.subr.mxu0 0.0
      %1464 = vmatpush1.msra.mxu0 0.0
      %1465 = vmatprep.subr.mxu0 0.0
      %1466 = vmatpush1.msra.mxu0 0.0
      %1467 = vmatprep.subr.mxu0 0.0
      %1468 = vmatpush1.msra.mxu0 0.0
      %1469 = vmatprep.subr.mxu0 0.0
      %1470 = vmatpush1.msra.mxu0 0.0
      %1471 = vmatprep.subr.mxu0 0.0
      %1472 = vmatpush1.msra.mxu0 0.0
      %1473 = vmatprep.subr.mxu0 0.0
      %1474 = vmatpush1.msra.mxu0 0.0
      %1475 = vmatprep.subr.mxu0 0.0
      %1476 = vmatpush1.msra.mxu0 0.0
      %1477 = vmatprep.subr.mxu0 0.0
      %1478 = vmatpush1.msra.mxu0 0.0
      %1479 = vmatprep.subr.mxu0 0.0
      %1480 = vmatpush1.msra.mxu0 0.0
      %1481 = vmatprep.subr.mxu0 0.0
      %1482 = vmatpush1.msra.mxu0 0.0
      %1483 = vmatprep.subr.mxu0 0.0
      %1484 = vmatpush1.msra.mxu0 0.0
      %1485 = vmatprep.subr.mxu0 0.0
      %1486 = vmatpush1.msra.mxu0 0.0
      %1487 = vmatprep.subr.mxu0 0.0
      %1488 = vmatpush1.msra.mxu0 0.0
      %1489 = vmatprep.subr.mxu0 0.0
      %1490 = vmatpush1.msra.mxu0 0.0
      %1491 = vmatprep.subr.mxu0 0.0
      %1492 = vmatpush1.msra.mxu0 0.0
      %1493 = vmatprep.subr.mxu0 0.0
      %1494 = vmatpush1.msra.mxu0 0.0
      %1495 = vmatprep.subr.mxu0 0.0
      %1496 = vmatpush1.msra.mxu0 0.0
      %1497 = vmatprep.subr.mxu0 0.0
      %1498 = vmatpush1.msra.mxu0 0.0
      %1499 = vmatprep.subr.mxu0 0.0
      %1500 = vmatpush1.msra.mxu0 0.0
      %1501 = vmatprep.subr.mxu0 0.0
      %1502 = vmatpush1.msra.mxu0 0.0
      %1503 = vmatprep.subr.mxu0 0.0
      %1504 = vmatpush1.msra.mxu0 0.0
      %1505 = vmatprep.subr.mxu0 0.0
      %1506 = vmatpush1.msra.mxu0 0.0
      %1507 = vmatprep.subr.mxu0 0.0
      %1508 = vmatpush1.msra.mxu0 0.0
      %1509 = vmatprep.mubr.f32.mxu0 0.0
      %1510 = vmatmul.mubr.f32.gmra.mrb[0].mxu0 %v1443
      %v1511 = vpop.f32.mrb[0].mxu0
      %v1512 = vadd.f32 %v83, %v1511
      %v1513 = vpop.f32.mrb[0].mxu0
      %1514 = vdwg.mxu0
      %v1515 = vmul.f32 %v128, %v1512
      %v1516 = vadd.f32 %v1141, %v1515
      %1518 = vset.pattern.permute.xlu0 0
      %1519 = vperm.xlu0 %1518, %v1516
      %v1520 = vpop.permute.xlu0 %1519
      %v1522 = vmul.f32 %v1520, %v88
      %1523 = vset.pattern.permute.xlu0 1
      %1524 = vperm.xlu0 %1523, %v1516
      %v1525 = vpop.permute.xlu0 %1524
      %v1527 = vmul.f32 %v1525, %v92
      %1528 = vset.pattern.permute.xlu0 2
      %1529 = vperm.xlu0 %1528, %v1516
      %v1530 = vpop.permute.xlu0 %1529
      %v1532 = vmul.f32 %v1530, %v96
      %1533 = vset.pattern.permute.xlu0 3
      %1534 = vperm.xlu0 %1533, %v1516
      %v1535 = vpop.permute.xlu0 %1534
      %v1537 = vmul.f32 %v1535, %v100
      %1538 = vset.pattern.permute.xlu0 4
      %1539 = vperm.xlu0 %1538, %v1516
      %v1540 = vpop.permute.xlu0 %1539
      %v1542 = vmul.f32 %v1540, %v104
      %1543 = vset.pattern.permute.xlu0 5
      %1544 = vperm.xlu0 %1543, %v1516
      %v1545 = vpop.permute.xlu0 %1544
      %v1547 = vmul.f32 %v1545, %v108
      %1548 = vset.pattern.permute.xlu0 6
      %1549 = vperm.xlu0 %1548, %v1516
      %v1550 = vpop.permute.xlu0 %1549
      %v1552 = vmul.f32 %v1550, %v112
      %1553 = vset.pattern.permute.xlu0 7
      %1554 = vperm.xlu0 %1553, %v1516
      %v1555 = vpop.permute.xlu0 %1554
      %v1557 = vmul.f32 %v1555, %v116
      %v1558 = vadd.f32 %v1522, %v1527
      %v1559 = vadd.f32 %v1532, %v1537
      %v1560 = vadd.f32 %v1542, %v1547
      %v1561 = vadd.f32 %v1552, %v1557
      %v1562 = vadd.f32 %v1558, %v1559
      %v1563 = vadd.f32 %v1560, %v1561
      %v1564 = vadd.f32 %v1562, %v1563
      %v1565 = vadd.f32 %v1564, %v76
      %v1566 = vtanh.pop %v1565
      %v1568 = vsel %vm183, %v1566, 0
      %1570 = vmatprep.subr.mxu0 0.0
      %1571 = vmatpush1.msra.mxu0 %v67
      %1572 = vmatprep.subr.mxu0 0.0
      %1573 = vmatpush1.msra.mxu0 %v68
      %1574 = vmatprep.subr.mxu0 0.0
      %1575 = vmatpush1.msra.mxu0 %v69
      %1576 = vmatprep.subr.mxu0 0.0
      %1577 = vmatpush1.msra.mxu0 %v70
      %1578 = vmatprep.subr.mxu0 0.0
      %1579 = vmatpush1.msra.mxu0 0.0
      %1580 = vmatprep.subr.mxu0 0.0
      %1581 = vmatpush1.msra.mxu0 0.0
      %1582 = vmatprep.subr.mxu0 0.0
      %1583 = vmatpush1.msra.mxu0 0.0
      %1584 = vmatprep.subr.mxu0 0.0
      %1585 = vmatpush1.msra.mxu0 0.0
      %1586 = vmatprep.subr.mxu0 0.0
      %1587 = vmatpush1.msra.mxu0 0.0
      %1588 = vmatprep.subr.mxu0 0.0
      %1589 = vmatpush1.msra.mxu0 0.0
      %1590 = vmatprep.subr.mxu0 0.0
      %1591 = vmatpush1.msra.mxu0 0.0
      %1592 = vmatprep.subr.mxu0 0.0
      %1593 = vmatpush1.msra.mxu0 0.0
      %1594 = vmatprep.subr.mxu0 0.0
      %1595 = vmatpush1.msra.mxu0 0.0
      %1596 = vmatprep.subr.mxu0 0.0
      %1597 = vmatpush1.msra.mxu0 0.0
      %1598 = vmatprep.subr.mxu0 0.0
      %1599 = vmatpush1.msra.mxu0 0.0
      %1600 = vmatprep.subr.mxu0 0.0
      %1601 = vmatpush1.msra.mxu0 0.0
      %1602 = vmatprep.subr.mxu0 0.0
      %1603 = vmatpush1.msra.mxu0 0.0
      %1604 = vmatprep.subr.mxu0 0.0
      %1605 = vmatpush1.msra.mxu0 0.0
      %1606 = vmatprep.subr.mxu0 0.0
      %1607 = vmatpush1.msra.mxu0 0.0
      %1608 = vmatprep.subr.mxu0 0.0
      %1609 = vmatpush1.msra.mxu0 0.0
      %1610 = vmatprep.subr.mxu0 0.0
      %1611 = vmatpush1.msra.mxu0 0.0
      %1612 = vmatprep.subr.mxu0 0.0
      %1613 = vmatpush1.msra.mxu0 0.0
      %1614 = vmatprep.subr.mxu0 0.0
      %1615 = vmatpush1.msra.mxu0 0.0
      %1616 = vmatprep.subr.mxu0 0.0
      %1617 = vmatpush1.msra.mxu0 0.0
      %1618 = vmatprep.subr.mxu0 0.0
      %1619 = vmatpush1.msra.mxu0 0.0
      %1620 = vmatprep.subr.mxu0 0.0
      %1621 = vmatpush1.msra.mxu0 0.0
      %1622 = vmatprep.subr.mxu0 0.0
      %1623 = vmatpush1.msra.mxu0 0.0
      %1624 = vmatprep.subr.mxu0 0.0
      %1625 = vmatpush1.msra.mxu0 0.0
      %1626 = vmatprep.subr.mxu0 0.0
      %1627 = vmatpush1.msra.mxu0 0.0
      %1628 = vmatprep.subr.mxu0 0.0
      %1629 = vmatpush1.msra.mxu0 0.0
      %1630 = vmatprep.subr.mxu0 0.0
      %1631 = vmatpush1.msra.mxu0 0.0
      %1632 = vmatprep.subr.mxu0 0.0
      %1633 = vmatpush1.msra.mxu0 0.0
      %1634 = vmatprep.mubr.f32.mxu0 0.0
      %1635 = vmatmul.mubr.f32.gmra.mrb[0].mxu0 %v1568
      %v1636 = vpop.f32.mrb[0].mxu0
      %v1637 = vadd.f32 %v83, %v1636
      %v1638 = vpop.f32.mrb[0].mxu0
      %1639 = vdwg.mxu0
      %v1640 = vadd.f32 %v1387, %v1512
      %v1641 = vmul.f32 %v1640, 2.0
      %v1642 = vadd.f32 %v1262, %v1641
      %v1643 = vadd.f32 %v1642, %v1637
      %v1644 = vmul.f32 %v132, %v1643
      %v1645 = vadd.f32 %v1141, %v1644
      %1647 = vset.pattern.permute.xlu0 0
      %1648 = vperm.xlu0 %1647, %v1645
      %v1649 = vpop.permute.xlu0 %1648
      %v1651 = vmul.f32 %v1649, %v88
      %1652 = vset.pattern.permute.xlu0 1
      %1653 = vperm.xlu0 %1652, %v1645
      %v1654 = vpop.permute.xlu0 %1653
      %v1656 = vmul.f32 %v1654, %v92
      %1657 = vset.pattern.permute.xlu0 2
      %1658 = vperm.xlu0 %1657, %v1645
      %v1659 = vpop.permute.xlu0 %1658
      %v1661 = vmul.f32 %v1659, %v96
      %1662 = vset.pattern.permute.xlu0 3
      %1663 = vperm.xlu0 %1662, %v1645
      %v1664 = vpop.permute.xlu0 %1663
      %v1666 = vmul.f32 %v1664, %v100
      %1667 = vset.pattern.permute.xlu0 4
      %1668 = vperm.xlu0 %1667, %v1645
      %v1669 = vpop.permute.xlu0 %1668
      %v1671 = vmul.f32 %v1669, %v104
      %1672 = vset.pattern.permute.xlu0 5
      %1673 = vperm.xlu0 %1672, %v1645
      %v1674 = vpop.permute.xlu0 %1673
      %v1676 = vmul.f32 %v1674, %v108
      %1677 = vset.pattern.permute.xlu0 6
      %1678 = vperm.xlu0 %1677, %v1645
      %v1679 = vpop.permute.xlu0 %1678
      %v1681 = vmul.f32 %v1679, %v112
      %1682 = vset.pattern.permute.xlu0 7
      %1683 = vperm.xlu0 %1682, %v1645
      %v1684 = vpop.permute.xlu0 %1683
      %v1686 = vmul.f32 %v1684, %v116
      %v1687 = vadd.f32 %v1651, %v1656
      %v1688 = vadd.f32 %v1661, %v1666
      %v1689 = vadd.f32 %v1671, %v1676
      %v1690 = vadd.f32 %v1681, %v1686
      %v1691 = vadd.f32 %v1687, %v1688
      %v1692 = vadd.f32 %v1689, %v1690
      %v1693 = vadd.f32 %v1691, %v1692
      %v1694 = vadd.f32 %v1693, %v76
      %v1695 = vtanh.pop %v1694
      %v1697 = vsel %vm183, %v1695, 0
      %1699 = vmatprep.subr.mxu0 0.0
      %1700 = vmatpush1.msra.mxu0 %v67
      %1701 = vmatprep.subr.mxu0 0.0
      %1702 = vmatpush1.msra.mxu0 %v68
      %1703 = vmatprep.subr.mxu0 0.0
      %1704 = vmatpush1.msra.mxu0 %v69
      %1705 = vmatprep.subr.mxu0 0.0
      %1706 = vmatpush1.msra.mxu0 %v70
      %1707 = vmatprep.subr.mxu0 0.0
      %1708 = vmatpush1.msra.mxu0 0.0
      %1709 = vmatprep.subr.mxu0 0.0
      %1710 = vmatpush1.msra.mxu0 0.0
      %1711 = vmatprep.subr.mxu0 0.0
      %1712 = vmatpush1.msra.mxu0 0.0
      %1713 = vmatprep.subr.mxu0 0.0
      %1714 = vmatpush1.msra.mxu0 0.0
      %1715 = vmatprep.subr.mxu0 0.0
      %1716 = vmatpush1.msra.mxu0 0.0
      %1717 = vmatprep.subr.mxu0 0.0
      %1718 = vmatpush1.msra.mxu0 0.0
      %1719 = vmatprep.subr.mxu0 0.0
      %1720 = vmatpush1.msra.mxu0 0.0
      %1721 = vmatprep.subr.mxu0 0.0
      %1722 = vmatpush1.msra.mxu0 0.0
      %1723 = vmatprep.subr.mxu0 0.0
      %1724 = vmatpush1.msra.mxu0 0.0
      %1725 = vmatprep.subr.mxu0 0.0
      %1726 = vmatpush1.msra.mxu0 0.0
      %1727 = vmatprep.subr.mxu0 0.0
      %1728 = vmatpush1.msra.mxu0 0.0
      %1729 = vmatprep.subr.mxu0 0.0
      %1730 = vmatpush1.msra.mxu0 0.0
      %1731 = vmatprep.subr.mxu0 0.0
      %1732 = vmatpush1.msra.mxu0 0.0
      %1733 = vmatprep.subr.mxu0 0.0
      %1734 = vmatpush1.msra.mxu0 0.0
      %1735 = vmatprep.subr.mxu0 0.0
      %1736 = vmatpush1.msra.mxu0 0.0
      %1737 = vmatprep.subr.mxu0 0.0
      %1738 = vmatpush1.msra.mxu0 0.0
      %1739 = vmatprep.subr.mxu0 0.0
      %1740 = vmatpush1.msra.mxu0 0.0
      %1741 = vmatprep.subr.mxu0 0.0
      %1742 = vmatpush1.msra.mxu0 0.0
      %1743 = vmatprep.subr.mxu0 0.0
      %1744 = vmatpush1.msra.mxu0 0.0
      %1745 = vmatprep.subr.mxu0 0.0
      %1746 = vmatpush1.msra.mxu0 0.0
      %1747 = vmatprep.subr.mxu0 0.0
      %1748 = vmatpush1.msra.mxu0 0.0
      %1749 = vmatprep.subr.mxu0 0.0
      %1750 = vmatpush1.msra.mxu0 0.0
      %1751 = vmatprep.subr.mxu0 0.0
      %1752 = vmatpush1.msra.mxu0 0.0
      %1753 = vmatprep.subr.mxu0 0.0
      %1754 = vmatpush1.msra.mxu0 0.0
      %1755 = vmatprep.subr.mxu0 0.0
      %1756 = vmatpush1.msra.mxu0 0.0
      %1757 = vmatprep.subr.mxu0 0.0
      %1758 = vmatpush1.msra.mxu0 0.0
      %1759 = vmatprep.subr.mxu0 0.0
      %1760 = vmatpush1.msra.mxu0 0.0
      %1761 = vmatprep.subr.mxu0 0.0
      %1762 = vmatpush1.msra.mxu0 0.0
      %1763 = vmatprep.mubr.f32.mxu0 0.0
      %1764 = vmatmul.mubr.f32.gmra.mrb[0].mxu0 %v1697
      %v1765 = vpop.f32.mrb[0].mxu0
      %v1766 = vadd.f32 %v83, %v1765
      %v1767 = vpop.f32.mrb[0].mxu0
      %1768 = vdwg.mxu0
      %v1769 = vmul.f32 %v130, %v1766
      %v1770 = vadd.f32 %v1645, %v1769
      %1772 = vset.pattern.permute.xlu0 0
      %1773 = vperm.xlu0 %1772, %v1770
      %v1774 = vpop.permute.xlu0 %1773
      %v1776 = vmul.f32 %v1774, %v88
      %1777 = vset.pattern.permute.xlu0 1
      %1778 = vperm.xlu0 %1777, %v1770
      %v1779 = vpop.permute.xlu0 %1778
      %v1781 = vmul.f32 %v1779, %v92
      %1782 = vset.pattern.permute.xlu0 2
      %1783 = vperm.xlu0 %1782, %v1770
      %v1784 = vpop.permute.xlu0 %1783
      %v1786 = vmul.f32 %v1784, %v96
      %1787 = vset.pattern.permute.xlu0 3
      %1788 = vperm.xlu0 %1787, %v1770
      %v1789 = vpop.permute.xlu0 %1788
      %v1791 = vmul.f32 %v1789, %v100
      %1792 = vset.pattern.permute.xlu0 4
      %1793 = vperm.xlu0 %1792, %v1770
      %v1794 = vpop.permute.xlu0 %1793
      %v1796 = vmul.f32 %v1794, %v104
      %1797 = vset.pattern.permute.xlu0 5
      %1798 = vperm.xlu0 %1797, %v1770
      %v1799 = vpop.permute.xlu0 %1798
      %v1801 = vmul.f32 %v1799, %v108
      %1802 = vset.pattern.permute.xlu0 6
      %1803 = vperm.xlu0 %1802, %v1770
      %v1804 = vpop.permute.xlu0 %1803
      %v1806 = vmul.f32 %v1804, %v112
      %1807 = vset.pattern.permute.xlu0 7
      %1808 = vperm.xlu0 %1807, %v1770
      %v1809 = vpop.permute.xlu0 %1808
      %v1811 = vmul.f32 %v1809, %v116
      %v1812 = vadd.f32 %v1776, %v1781
      %v1813 = vadd.f32 %v1786, %v1791
      %v1814 = vadd.f32 %v1796, %v1801
      %v1815 = vadd.f32 %v1806, %v1811
      %v1816 = vadd.f32 %v1812, %v1813
      %v1817 = vadd.f32 %v1814, %v1815
      %v1818 = vadd.f32 %v1816, %v1817
      %v1819 = vadd.f32 %v1818, %v76
      %v1820 = vtanh.pop %v1819
      %v1822 = vsel %vm183, %v1820, 0
      %1824 = vmatprep.subr.mxu0 0.0
      %1825 = vmatpush1.msra.mxu0 %v67
      %1826 = vmatprep.subr.mxu0 0.0
      %1827 = vmatpush1.msra.mxu0 %v68
      %1828 = vmatprep.subr.mxu0 0.0
      %1829 = vmatpush1.msra.mxu0 %v69
      %1830 = vmatprep.subr.mxu0 0.0
      %1831 = vmatpush1.msra.mxu0 %v70
      %1832 = vmatprep.subr.mxu0 0.0
      %1833 = vmatpush1.msra.mxu0 0.0
      %1834 = vmatprep.subr.mxu0 0.0
      %1835 = vmatpush1.msra.mxu0 0.0
      %1836 = vmatprep.subr.mxu0 0.0
      %1837 = vmatpush1.msra.mxu0 0.0
      %1838 = vmatprep.subr.mxu0 0.0
      %1839 = vmatpush1.msra.mxu0 0.0
      %1840 = vmatprep.subr.mxu0 0.0
      %1841 = vmatpush1.msra.mxu0 0.0
      %1842 = vmatprep.subr.mxu0 0.0
      %1843 = vmatpush1.msra.mxu0 0.0
      %1844 = vmatprep.subr.mxu0 0.0
      %1845 = vmatpush1.msra.mxu0 0.0
      %1846 = vmatprep.subr.mxu0 0.0
      %1847 = vmatpush1.msra.mxu0 0.0
      %1848 = vmatprep.subr.mxu0 0.0
      %1849 = vmatpush1.msra.mxu0 0.0
      %1850 = vmatprep.subr.mxu0 0.0
      %1851 = vmatpush1.msra.mxu0 0.0
      %1852 = vmatprep.subr.mxu0 0.0
      %1853 = vmatpush1.msra.mxu0 0.0
      %1854 = vmatprep.subr.mxu0 0.0
      %1855 = vmatpush1.msra.mxu0 0.0
      %1856 = vmatprep.subr.mxu0 0.0
      %1857 = vmatpush1.msra.mxu0 0.0
      %1858 = vmatprep.subr.mxu0 0.0
      %1859 = vmatpush1.msra.mxu0 0.0
      %1860 = vmatprep.subr.mxu0 0.0
      %1861 = vmatpush1.msra.mxu0 0.0
      %1862 = vmatprep.subr.mxu0 0.0
      %1863 = vmatpush1.msra.mxu0 0.0
      %1864 = vmatprep.subr.mxu0 0.0
      %1865 = vmatpush1.msra.mxu0 0.0
      %1866 = vmatprep.subr.mxu0 0.0
      %1867 = vmatpush1.msra.mxu0 0.0
      %1868 = vmatprep.subr.mxu0 0.0
      %1869 = vmatpush1.msra.mxu0 0.0
      %1870 = vmatprep.subr.mxu0 0.0
      %1871 = vmatpush1.msra.mxu0 0.0
      %1872 = vmatprep.subr.mxu0 0.0
      %1873 = vmatpush1.msra.mxu0 0.0
      %1874 = vmatprep.subr.mxu0 0.0
      %1875 = vmatpush1.msra.mxu0 0.0
      %1876 = vmatprep.subr.mxu0 0.0
      %1877 = vmatpush1.msra.mxu0 0.0
      %1878 = vmatprep.subr.mxu0 0.0
      %1879 = vmatpush1.msra.mxu0 0.0
      %1880 = vmatprep.subr.mxu0 0.0
      %1881 = vmatpush1.msra.mxu0 0.0
      %1882 = vmatprep.subr.mxu0 0.0
      %1883 = vmatpush1.msra.mxu0 0.0
      %1884 = vmatprep.subr.mxu0 0.0
      %1885 = vmatpush1.msra.mxu0 0.0
      %1886 = vmatprep.subr.mxu0 0.0
      %1887 = vmatpush1.msra.mxu0 0.0
      %1888 = vmatprep.mubr.f32.mxu0 0.0
      %1889 = vmatmul.mubr.f32.gmra.mrb[0].mxu0 %v1822
      %v1890 = vpop.f32.mrb[0].mxu0
      %v1891 = vadd.f32 %v83, %v1890
      %v1892 = vpop.f32.mrb[0].mxu0
      %1893 = vdwg.mxu0
      %v1894 = vmul.f32 %v130, %v1891
      %v1895 = vadd.f32 %v1645, %v1894
      %1897 = vset.pattern.permute.xlu0 0
      %1898 = vperm.xlu0 %1897, %v1895
      %v1899 = vpop.permute.xlu0 %1898
      %v1901 = vmul.f32 %v1899, %v88
      %1902 = vset.pattern.permute.xlu0 1
      %1903 = vperm.xlu0 %1902, %v1895
      %v1904 = vpop.permute.xlu0 %1903
      %v1906 = vmul.f32 %v1904, %v92
      %1907 = vset.pattern.permute.xlu0 2
      %1908 = vperm.xlu0 %1907, %v1895
      %v1909 = vpop.permute.xlu0 %1908
      %v1911 = vmul.f32 %v1909, %v96
      %1912 = vset.pattern.permute.xlu0 3
      %1913 = vperm.xlu0 %1912, %v1895
      %v1914 = vpop.permute.xlu0 %1913
      %v1916 = vmul.f32 %v1914, %v100
      %1917 = vset.pattern.permute.xlu0 4
      %1918 = vperm.xlu0 %1917, %v1895
      %v1919 = vpop.permute.xlu0 %1918
      %v1921 = vmul.f32 %v1919, %v104
      %1922 = vset.pattern.permute.xlu0 5
      %1923 = vperm.xlu0 %1922, %v1895
      %v1924 = vpop.permute.xlu0 %1923
      %v1926 = vmul.f32 %v1924, %v108
      %1927 = vset.pattern.permute.xlu0 6
      %1928 = vperm.xlu0 %1927, %v1895
      %v1929 = vpop.permute.xlu0 %1928
      %v1931 = vmul.f32 %v1929, %v112
      %1932 = vset.pattern.permute.xlu0 7
      %1933 = vperm.xlu0 %1932, %v1895
      %v1934 = vpop.permute.xlu0 %1933
      %v1936 = vmul.f32 %v1934, %v116
      %v1937 = vadd.f32 %v1901, %v1906
      %v1938 = vadd.f32 %v1911, %v1916
      %v1939 = vadd.f32 %v1921, %v1926
      %v1940 = vadd.f32 %v1931, %v1936
      %v1941 = vadd.f32 %v1937, %v1938
      %v1942 = vadd.f32 %v1939, %v1940
      %v1943 = vadd.f32 %v1941, %v1942
      %v1944 = vadd.f32 %v1943, %v76
      %v1945 = vtanh.pop %v1944
      %v1947 = vsel %vm183, %v1945, 0
      %1949 = vmatprep.subr.mxu0 0.0
      %1950 = vmatpush1.msra.mxu0 %v67
      %1951 = vmatprep.subr.mxu0 0.0
      %1952 = vmatpush1.msra.mxu0 %v68
      %1953 = vmatprep.subr.mxu0 0.0
      %1954 = vmatpush1.msra.mxu0 %v69
      %1955 = vmatprep.subr.mxu0 0.0
      %1956 = vmatpush1.msra.mxu0 %v70
      %1957 = vmatprep.subr.mxu0 0.0
      %1958 = vmatpush1.msra.mxu0 0.0
      %1959 = vmatprep.subr.mxu0 0.0
      %1960 = vmatpush1.msra.mxu0 0.0
      %1961 = vmatprep.subr.mxu0 0.0
      %1962 = vmatpush1.msra.mxu0 0.0
      %1963 = vmatprep.subr.mxu0 0.0
      %1964 = vmatpush1.msra.mxu0 0.0
      %1965 = vmatprep.subr.mxu0 0.0
      %1966 = vmatpush1.msra.mxu0 0.0
      %1967 = vmatprep.subr.mxu0 0.0
      %1968 = vmatpush1.msra.mxu0 0.0
      %1969 = vmatprep.subr.mxu0 0.0
      %1970 = vmatpush1.msra.mxu0 0.0
      %1971 = vmatprep.subr.mxu0 0.0
      %1972 = vmatpush1.msra.mxu0 0.0
      %1973 = vmatprep.subr.mxu0 0.0
      %1974 = vmatpush1.msra.mxu0 0.0
      %1975 = vmatprep.subr.mxu0 0.0
      %1976 = vmatpush1.msra.mxu0 0.0
      %1977 = vmatprep.subr.mxu0 0.0
      %1978 = vmatpush1.msra.mxu0 0.0
      %1979 = vmatprep.subr.mxu0 0.0
      %1980 = vmatpush1.msra.mxu0 0.0
      %1981 = vmatprep.subr.mxu0 0.0
      %1982 = vmatpush1.msra.mxu0 0.0
      %1983 = vmatprep.subr.mxu0 0.0
      %1984 = vmatpush1.msra.mxu0 0.0
      %1985 = vmatprep.subr.mxu0 0.0
      %1986 = vmatpush1.msra.mxu0 0.0
      %1987 = vmatprep.subr.mxu0 0.0
      %1988 = vmatpush1.msra.mxu0 0.0
      %1989 = vmatprep.subr.mxu0 0.0
      %1990 = vmatpush1.msra.mxu0 0.0
      %1991 = vmatprep.subr.mxu0 0.0
      %1992 = vmatpush1.msra.mxu0 0.0
      %1993 = vmatprep.subr.mxu0 0.0
      %1994 = vmatpush1.msra.mxu0 0.0
      %1995 = vmatprep.subr.mxu0 0.0
      %1996 = vmatpush1.msra.mxu0 0.0
      %1997 = vmatprep.subr.mxu0 0.0
      %1998 = vmatpush1.msra.mxu0 0.0
      %1999 = vmatprep.subr.mxu0 0.0
      %2000 = vmatpush1.msra.mxu0 0.0
      %2001 = vmatprep.subr.mxu0 0.0
      %2002 = vmatpush1.msra.mxu0 0.0
      %2003 = vmatprep.subr.mxu0 0.0
      %2004 = vmatpush1.msra.mxu0 0.0
      %2005 = vmatprep.subr.mxu0 0.0
      %2006 = vmatpush1.msra.mxu0 0.0
      %2007 = vmatprep.subr.mxu0 0.0
      %2008 = vmatpush1.msra.mxu0 0.0
      %2009 = vmatprep.subr.mxu0 0.0
      %2010 = vmatpush1.msra.mxu0 0.0
      %2011 = vmatprep.subr.mxu0 0.0
      %2012 = vmatpush1.msra.mxu0 0.0
      %2013 = vmatprep.mubr.f32.mxu0 0.0
      %2014 = vmatmul.mubr.f32.gmra.mrb[0].mxu0 %v1947
      %v2015 = vpop.f32.mrb[0].mxu0
      %v2016 = vadd.f32 %v83, %v2015
      %v2017 = vpop.f32.mrb[0].mxu0
      %2018 = vdwg.mxu0
      %v2019 = vmul.f32 %v128, %v2016
      %v2020 = vadd.f32 %v1645, %v2019
      %2022 = vset.pattern.permute.xlu0 0
      %2023 = vperm.xlu0 %2022, %v2020
      %v2024 = vpop.permute.xlu0 %2023
      %v2026 = vmul.f32 %v2024, %v88
      %2027 = vset.pattern.permute.xlu0 1
      %2028 = vperm.xlu0 %2027, %v2020
      %v2029 = vpop.permute.xlu0 %2028
      %v2031 = vmul.f32 %v2029, %v92
      %2032 = vset.pattern.permute.xlu0 2
      %2033 = vperm.xlu0 %2032, %v2020
      %v2034 = vpop.permute.xlu0 %2033
      %v2036 = vmul.f32 %v2034, %v96
      %2037 = vset.pattern.permute.xlu0 3
      %2038 = vperm.xlu0 %2037, %v2020
      %v2039 = vpop.permute.xlu0 %2038
      %v2041 = vmul.f32 %v2039, %v100
      %2042 = vset.pattern.permute.xlu0 4
      %2043 = vperm.xlu0 %2042, %v2020
      %v2044 = vpop.permute.xlu0 %2043
      %v2046 = vmul.f32 %v2044, %v104
      %2047 = vset.pattern.permute.xlu0 5
      %2048 = vperm.xlu0 %2047, %v2020
      %v2049 = vpop.permute.xlu0 %2048
      %v2051 = vmul.f32 %v2049, %v108
      %2052 = vset.pattern.permute.xlu0 6
      %2053 = vperm.xlu0 %2052, %v2020
      %v2054 = vpop.permute.xlu0 %2053
      %v2056 = vmul.f32 %v2054, %v112
      %2057 = vset.pattern.permute.xlu0 7
      %2058 = vperm.xlu0 %2057, %v2020
      %v2059 = vpop.permute.xlu0 %2058
      %v2061 = vmul.f32 %v2059, %v116
      %v2062 = vadd.f32 %v2026, %v2031
      %v2063 = vadd.f32 %v2036, %v2041
      %v2064 = vadd.f32 %v2046, %v2051
      %v2065 = vadd.f32 %v2056, %v2061
      %v2066 = vadd.f32 %v2062, %v2063
      %v2067 = vadd.f32 %v2064, %v2065
      %v2068 = vadd.f32 %v2066, %v2067
      %v2069 = vadd.f32 %v2068, %v76
      %v2070 = vtanh.pop %v2069
      %v2072 = vsel %vm183, %v2070, 0
      %2074 = vmatprep.subr.mxu0 0.0
      %2075 = vmatpush1.msra.mxu0 %v67
      %2076 = vmatprep.subr.mxu0 0.0
      %2077 = vmatpush1.msra.mxu0 %v68
      %2078 = vmatprep.subr.mxu0 0.0
      %2079 = vmatpush1.msra.mxu0 %v69
      %2080 = vmatprep.subr.mxu0 0.0
      %2081 = vmatpush1.msra.mxu0 %v70
      %2082 = vmatprep.subr.mxu0 0.0
      %2083 = vmatpush1.msra.mxu0 0.0
      %2084 = vmatprep.subr.mxu0 0.0
      %2085 = vmatpush1.msra.mxu0 0.0
      %2086 = vmatprep.subr.mxu0 0.0
      %2087 = vmatpush1.msra.mxu0 0.0
      %2088 = vmatprep.subr.mxu0 0.0
      %2089 = vmatpush1.msra.mxu0 0.0
      %2090 = vmatprep.subr.mxu0 0.0
      %2091 = vmatpush1.msra.mxu0 0.0
      %2092 = vmatprep.subr.mxu0 0.0
      %2093 = vmatpush1.msra.mxu0 0.0
      %2094 = vmatprep.subr.mxu0 0.0
      %2095 = vmatpush1.msra.mxu0 0.0
      %2096 = vmatprep.subr.mxu0 0.0
      %2097 = vmatpush1.msra.mxu0 0.0
      %2098 = vmatprep.subr.mxu0 0.0
      %2099 = vmatpush1.msra.mxu0 0.0
      %2100 = vmatprep.subr.mxu0 0.0
      %2101 = vmatpush1.msra.mxu0 0.0
      %2102 = vmatprep.subr.mxu0 0.0
      %2103 = vmatpush1.msra.mxu0 0.0
      %2104 = vmatprep.subr.mxu0 0.0
      %2105 = vmatpush1.msra.mxu0 0.0
      %2106 = vmatprep.subr.mxu0 0.0
      %2107 = vmatpush1.msra.mxu0 0.0
      %2108 = vmatprep.subr.mxu0 0.0
      %2109 = vmatpush1.msra.mxu0 0.0
      %2110 = vmatprep.subr.mxu0 0.0
      %2111 = vmatpush1.msra.mxu0 0.0
      %2112 = vmatprep.subr.mxu0 0.0
      %2113 = vmatpush1.msra.mxu0 0.0
      %2114 = vmatprep.subr.mxu0 0.0
      %2115 = vmatpush1.msra.mxu0 0.0
      %2116 = vmatprep.subr.mxu0 0.0
      %2117 = vmatpush1.msra.mxu0 0.0
      %2118 = vmatprep.subr.mxu0 0.0
      %2119 = vmatpush1.msra.mxu0 0.0
      %2120 = vmatprep.subr.mxu0 0.0
      %2121 = vmatpush1.msra.mxu0 0.0
      %2122 = vmatprep.subr.mxu0 0.0
      %2123 = vmatpush1.msra.mxu0 0.0
      %2124 = vmatprep.subr.mxu0 0.0
      %2125 = vmatpush1.msra.mxu0 0.0
      %2126 = vmatprep.subr.mxu0 0.0
      %2127 = vmatpush1.msra.mxu0 0.0
      %2128 = vmatprep.subr.mxu0 0.0
      %2129 = vmatpush1.msra.mxu0 0.0
      %2130 = vmatprep.subr.mxu0 0.0
      %2131 = vmatpush1.msra.mxu0 0.0
      %2132 = vmatprep.subr.mxu0 0.0
      %2133 = vmatpush1.msra.mxu0 0.0
      %2134 = vmatprep.subr.mxu0 0.0
      %2135 = vmatpush1.msra.mxu0 0.0
      %2136 = vmatprep.subr.mxu0 0.0
      %2137 = vmatpush1.msra.mxu0 0.0
      %2138 = vmatprep.mubr.f32.mxu0 0.0
      %2139 = vmatmul.mubr.f32.gmra.mrb[0].mxu0 %v2072
      %v2140 = vpop.f32.mrb[0].mxu0
      %v2141 = vadd.f32 %v83, %v2140
      %v2142 = vpop.f32.mrb[0].mxu0
      %2143 = vdwg.mxu0
      %v2144 = vadd.f32 %v1891, %v2016
      %v2145 = vmul.f32 %v2144, 2.0
      %v2146 = vadd.f32 %v1766, %v2145
      %v2147 = vadd.f32 %v2146, %v2141
      %v2148 = vmul.f32 %v132, %v2147
      %v2149 = vadd.f32 %v1645, %v2148
      %s2150 = sadd.s32 %s121, 1
      %s2151 = scalar_lea.vmem [#allocation8], %s2150
      %2152 = vst.msk [vmem:[%s2151] sm:$0x1] %vm118, %v2149
    $region50: #{tpu_custom_call.1} parent=1 // loop_footer
      %s125 = sadd.s32 1, %s121
    $region51: #{tpu_custom_call.1} parent=1 // loop_footer_branch
      %120 = sbr.rel target = $region47
    $region52: #{tpu_custom_call.1} parent=1 // loop_exit
      _
    // Predicated region
    $region53: #{tpu_custom_call.1} parent=1 // pred_check
      _
    $region54: #{tpu_custom_call.1} parent=1 // pred_check_branch
      %2154 = sbr.rel (0) target = $region56
    $region55: #{tpu_custom_call.1} parent=1 // pred_region
      %s2156 = ssub.s32 128, 128
      %2157 = vsyncadd [#allocation3], %s2156
      %s2159 = sshll.u32 [#allocation8], 4
      %s2160 = int_to_ptr.vmem [resolvable:$true] %s2159
      %2162 = dma.vmem_to_hbm [thread:$0]  %s2160, 128, %s8, [#allocation3]
    $region56: #{tpu_custom_call.1} parent=1 // pred_fallthru
      _
    // Predicated region
    $region57: #{tpu_custom_call.1} parent=1 // pred_check
      _
    $region58: #{tpu_custom_call.1} parent=1 // pred_check_branch
      %2164 = sbr.rel (0) target = $region60
    $region59: #{tpu_custom_call.1} parent=1 // pred_region
      %2165 = dma.done [#allocation3], 128
    $region60: #{tpu_custom_call.1} parent=1 // pred_fallthru
      _
    %2166 = vsyncpa [#allocation3], 1
    %2167 = vsyncpa [#allocation4], 1
    %2168 = vsyncpa [#allocation6], 1

</llo_original>
